<compile_context>
chip_gen: v6e
topology: v6e:2x2x1
jax: 0.10.0
libtpu: 0.0.40
codegen_flags: <defaults>
</compile_context>

<pallas_src>
import jax
import jax.numpy as jnp
from jax import lax
from jax.experimental import pallas as pl
from jax.experimental.pallas import tpu as pltpu

HIDDEN = 32      # param['hidden_dim']
BATCH = 2
N_PROT = 32      # stands in for the 1000 hard-coded residues of the reference
N_LAYERS = 7


# ---------------------------------------------------------------- fused kernel
def _sage_kernel(x_ref, adj_ref, wn_ref, wx_ref, b_ref, wf_ref, bf_ref, o_ref):
    x = x_ref[0]                                   # (N, D)
    adj = adj_ref[0]                               # (N, N)
    n = adj.shape[0]

    # adj[:, i, i] = 1  (one-time per batch, single select on the VPU)
    row = lax.broadcasted_iota(jnp.int32, (n, n), 0)
    col = lax.broadcasted_iota(jnp.int32, (n, n), 1)
    adj = jnp.where(row == col, 1.0, adj)

    # Symmetric normalization, kept factored to avoid an in-kernel transpose:
    #   adj_norm @ x == (d_is * adj) @ (d_is * x)
    deg = jnp.sum(adj, axis=1, keepdims=True)      # (N, 1) row degrees (>= 1)
    d_is = lax.rsqrt(deg)                          # degrees ** -0.5   (EUP slot)
    adj_rs = d_is * adj                            # row-scaled, computed once

    dot = lambda a, b_: jnp.dot(a, b_, preferred_element_type=jnp.float32)

    for l in range(N_LAYERS):                      # fully fused, unrolled stack
        x0 = x
        neigh = dot(adj_rs, d_is * x)              # == adj_norm @ x
        h = dot(neigh, wn_ref[l]) + dot(x, wx_ref[l]) + b_ref[l]
        x = jnp.maximum(h, 0.0) + x0               # ReLU + residual

    o_ref[0] = dot(x, wf_ref[...]) + bf_ref[...]   # linear_final


# ---------------------------------------------------------------- wrapper
def net_prot_sage(x, adj, params):
    b, n, d = x.shape
    w = params["w"]                                # (7, D, 2D)  torch Linear(2D, D), stacked
    bias = params["b"]                             # (7, D)
    wf = params["wf"]                              # (D, D)
    bf = params["bf"]                              # (D,)

    # cat([neigh, x]) @ W.T == neigh @ W[:, :D].T + x @ W[:, D:].T   (prepared once)
    wn_t = jnp.transpose(w[:, :, :d], (0, 2, 1))   # (7, D, D)
    wx_t = jnp.transpose(w[:, :, d:], (0, 2, 1))   # (7, D, D)
    b3 = bias.reshape(N_LAYERS, 1, d)

    def batch_spec(shape):
        return pl.BlockSpec(shape, lambda i, _s=shape: (i,) + (0,) * (len(_s) - 1))

    def full_spec(shape):
        return pl.BlockSpec(shape, lambda i, _s=shape: (0,) * len(_s))

    return pl.pallas_call(
        _sage_kernel,
        out_shape=jax.ShapeDtypeStruct((b, n, d), jnp.float32),
        grid=(b,),
        in_specs=[batch_spec((1, n, d)),           # x
                  batch_spec((1, n, n)),           # adj
                  full_spec((N_LAYERS, d, d)),     # Wn^T stack
                  full_spec((N_LAYERS, d, d)),     # Wx^T stack
                  full_spec((N_LAYERS, 1, d)),     # biases
                  full_spec((d, d)),               # Wf^T
                  full_spec((1, d))],              # bf
        out_specs=batch_spec((1, n, d)),
        compiler_params=pltpu.CompilerParams(
            dimension_semantics=("parallel",)),    # v7x: one batch per TensorCore
    )(x, adj, wn_t, wx_t, b3, wf.T, bf.reshape(1, d))


# ---------------------------------------------------------------- pure-JAX reference
def net_prot_sage_ref(x, adj, params):
    _, n, _ = x.shape
    eye = jnp.eye(n, dtype=jnp.float32)
    adj = adj * (1.0 - eye) + eye
    d_is = lax.rsqrt(jnp.sum(adj, axis=2))                         # (B, N)
    adj_norm = d_is[:, :, None] * adj * d_is[:, None, :]
    for l in range(N_LAYERS):
        x0 = x
        neigh = jnp.einsum("bij,bjd->bid", adj_norm, x)
        h = jnp.concatenate([neigh, x], axis=-1) @ params["w"][l].T + params["b"][l]
        x = jnp.maximum(h, 0.0) + x0
    return x @ params["wf"].T + params["bf"]


# ---------------------------------------------------------------- main
if __name__ == "__main__":
    d = HIDDEN
    keys = jax.random.split(jax.random.PRNGKey(0), 6)
    params = {
        "w": 0.1 * jax.random.normal(keys[0], (N_LAYERS, d, 2 * d), dtype=jnp.float32),
        "b": 0.1 * jax.random.normal(keys[1], (N_LAYERS, d), dtype=jnp.float32),
        "wf": 0.1 * jax.random.normal(keys[2], (d, d), dtype=jnp.float32),
        "bf": 0.1 * jax.random.normal(keys[3], (d,), dtype=jnp.float32),
    }
    x = jax.random.normal(keys[4], (BATCH, N_PROT, d), dtype=jnp.float32)
    a = (jax.random.uniform(keys[5], (BATCH, N_PROT, N_PROT)) < 0.2).astype(jnp.float32)
    adj = jnp.maximum(a, jnp.transpose(a, (0, 2, 1)))              # symmetric 0/1 contacts

    out = jax.jit(net_prot_sage)(x, adj, params)
    jax.block_until_ready(out)

    ref = net_prot_sage_ref(x, adj, params)
    assert out.shape == (BATCH, N_PROT, d)
    err = float(jnp.max(jnp.abs(out - ref)))
    assert jnp.allclose(out, ref, atol=2e-3, rtol=2e-3), f"max abs err {err}"
    print("KERNEL_OK")
</pallas_src>

<mosaic_0001>
module attributes {stable_mosaic.version = 11 : i64} {
  func.func @_sage_kernel(%arg0: i32, %arg1: memref<1x32x32xf32, #tpu.memory_space<vmem>>, %arg2: memref<1x32x32xf32, #tpu.memory_space<vmem>>, %arg3: memref<7x32x32xf32, #tpu.memory_space<vmem>>, %arg4: memref<7x32x32xf32, #tpu.memory_space<vmem>>, %arg5: memref<7x1x32xf32, #tpu.memory_space<vmem>>, %arg6: memref<32x32xf32, #tpu.memory_space<vmem>>, %arg7: memref<1x32xf32, #tpu.memory_space<vmem>>, %arg8: memref<1x32x32xf32, #tpu.memory_space<vmem>>) attributes {dimension_semantics = [#tpu.dimension_semantics<parallel>], iteration_bounds = array<i64: 2>, scalar_prefetch = 0 : i64, scratch_operands = 0 : i64, tpu.core_type = #tpu.core_type<tc>, window_params = [{transform_indices = @transform_0, window_bounds = array<i64: 1, 32, 32>}, {transform_indices = @transform_1, window_bounds = array<i64: 1, 32, 32>}, {pipeline_mode = #tpu.pipeline_mode<synchronous>, transform_indices = @transform_2, window_bounds = array<i64: 7, 32, 32>}, {pipeline_mode = #tpu.pipeline_mode<synchronous>, transform_indices = @transform_3, window_bounds = array<i64: 7, 32, 32>}, {pipeline_mode = #tpu.pipeline_mode<synchronous>, transform_indices = @transform_4, window_bounds = array<i64: 7, 1, 32>}, {pipeline_mode = #tpu.pipeline_mode<synchronous>, transform_indices = @transform_5, window_bounds = array<i64: 32, 32>}, {pipeline_mode = #tpu.pipeline_mode<synchronous>, transform_indices = @transform_6, window_bounds = array<i64: 1, 32>}, {transform_indices = @transform_7, window_bounds = array<i64: 1, 32, 32>}]} {
    %c0 = arith.constant 0 : index
    %c0_0 = arith.constant 0 : index
    %c0_1 = arith.constant 0 : index
    %0 = vector.load %arg1[%c0, %c0_0, %c0_1] : memref<1x32x32xf32, #tpu.memory_space<vmem>>, vector<1x32x32xf32>
    %1 = vector.shape_cast %0 : vector<1x32x32xf32> to vector<32x32xf32>
    %c0_2 = arith.constant 0 : index
    %c0_3 = arith.constant 0 : index
    %c0_4 = arith.constant 0 : index
    %2 = vector.load %arg2[%c0_2, %c0_3, %c0_4] : memref<1x32x32xf32, #tpu.memory_space<vmem>>, vector<1x32x32xf32>
    %3 = vector.shape_cast %2 : vector<1x32x32xf32> to vector<32x32xf32>
    %4 = tpu.iota {dimensions = array<i32: 0>} : vector<32x32xi32>
    %5 = tpu.iota {dimensions = array<i32: 1>} : vector<32x32xi32>
    %6 = arith.cmpi eq, %4, %5 : vector<32x32xi32>
    %cst = arith.constant 1.000000e+00 : f32
    %7 = vector.broadcast %cst : f32 to vector<32x32xf32>
    %8 = arith.select %6, %7, %3 : vector<32x32xi1>, vector<32x32xf32>
    %cst_5 = arith.constant dense<0.000000e+00> : vector<32xf32>
    %9 = vector.multi_reduction <add>, %8, %cst_5 [1] : vector<32x32xf32> to vector<32xf32>
    %10 = vector.shape_cast %9 : vector<32xf32> to vector<32x1xf32>
    %11 = math.rsqrt %10 : vector<32x1xf32>
    %12 = vector.broadcast %11 : vector<32x1xf32> to vector<32x32xf32>
    %13 = arith.mulf %12, %8 : vector<32x32xf32>
    %14 = vector.broadcast %11 : vector<32x1xf32> to vector<32x32xf32>
    %15 = arith.mulf %14, %1 : vector<32x32xf32>
    %cst_6 = arith.constant dense<0.000000e+00> : vector<32x32xf32>
    %16 = tpu.matmul %13, %15, %cst_6 {dimension_numbers = #tpu.dot_dimension_numbers<[1], [0], [0], [1], [0, 0, 1, 1], [], []>} : vector<32x32xf32>, vector<32x32xf32>, vector<32x32xf32> -> vector<32x32xf32>
    %c0_7 = arith.constant 0 : index
    %c0_8 = arith.constant 0 : index
    %c0_9 = arith.constant 0 : index
    %17 = vector.load %arg3[%c0_7, %c0_8, %c0_9] : memref<7x32x32xf32, #tpu.memory_space<vmem>>, vector<1x32x32xf32>
    %18 = vector.shape_cast %17 : vector<1x32x32xf32> to vector<32x32xf32>
    %cst_10 = arith.constant dense<0.000000e+00> : vector<32x32xf32>
    %19 = tpu.matmul %16, %18, %cst_10 {dimension_numbers = #tpu.dot_dimension_numbers<[1], [0], [0], [1], [0, 0, 1, 1], [], []>} : vector<32x32xf32>, vector<32x32xf32>, vector<32x32xf32> -> vector<32x32xf32>
    %c0_11 = arith.constant 0 : index
    %c0_12 = arith.constant 0 : index
    %c0_13 = arith.constant 0 : index
    %20 = vector.load %arg4[%c0_11, %c0_12, %c0_13] : memref<7x32x32xf32, #tpu.memory_space<vmem>>, vector<1x32x32xf32>
    %21 = vector.shape_cast %20 : vector<1x32x32xf32> to vector<32x32xf32>
    %cst_14 = arith.constant dense<0.000000e+00> : vector<32x32xf32>
    %22 = tpu.matmul %1, %21, %cst_14 {dimension_numbers = #tpu.dot_dimension_numbers<[1], [0], [0], [1], [0, 0, 1, 1], [], []>} : vector<32x32xf32>, vector<32x32xf32>, vector<32x32xf32> -> vector<32x32xf32>
    %23 = arith.addf %19, %22 : vector<32x32xf32>
    %c0_15 = arith.constant 0 : index
    %c0_16 = arith.constant 0 : index
    %c0_17 = arith.constant 0 : index
    %24 = vector.load %arg5[%c0_15, %c0_16, %c0_17] : memref<7x1x32xf32, #tpu.memory_space<vmem>>, vector<1x1x32xf32>
    %25 = vector.shape_cast %24 : vector<1x1x32xf32> to vector<1x32xf32>
    %26 = vector.broadcast %25 : vector<1x32xf32> to vector<32x32xf32>
    %27 = arith.addf %23, %26 : vector<32x32xf32>
    %cst_18 = arith.constant 0.000000e+00 : f32
    %28 = vector.broadcast %cst_18 : f32 to vector<32x32xf32>
    %29 = arith.maximumf %27, %28 : vector<32x32xf32>
    %30 = arith.addf %29, %1 : vector<32x32xf32>
    %31 = vector.broadcast %11 : vector<32x1xf32> to vector<32x32xf32>
    %32 = arith.mulf %31, %30 : vector<32x32xf32>
    %cst_19 = arith.constant dense<0.000000e+00> : vector<32x32xf32>
    %33 = tpu.matmul %13, %32, %cst_19 {dimension_numbers = #tpu.dot_dimension_numbers<[1], [0], [0], [1], [0, 0, 1, 1], [], []>} : vector<32x32xf32>, vector<32x32xf32>, vector<32x32xf32> -> vector<32x32xf32>
    %c1 = arith.constant 1 : index
    %c0_20 = arith.constant 0 : index
    %c0_21 = arith.constant 0 : index
    %34 = vector.load %arg3[%c1, %c0_20, %c0_21] : memref<7x32x32xf32, #tpu.memory_space<vmem>>, vector<1x32x32xf32>
    %35 = vector.shape_cast %34 : vector<1x32x32xf32> to vector<32x32xf32>
    %cst_22 = arith.constant dense<0.000000e+00> : vector<32x32xf32>
    %36 = tpu.matmul %33, %35, %cst_22 {dimension_numbers = #tpu.dot_dimension_numbers<[1], [0], [0], [1], [0, 0, 1, 1], [], []>} : vector<32x32xf32>, vector<32x32xf32>, vector<32x32xf32> -> vector<32x32xf32>
    %c1_23 = arith.constant 1 : index
    %c0_24 = arith.constant 0 : index
    %c0_25 = arith.constant 0 : index
    %37 = vector.load %arg4[%c1_23, %c0_24, %c0_25] : memref<7x32x32xf32, #tpu.memory_space<vmem>>, vector<1x32x32xf32>
    %38 = vector.shape_cast %37 : vector<1x32x32xf32> to vector<32x32xf32>
    %cst_26 = arith.constant dense<0.000000e+00> : vector<32x32xf32>
    %39 = tpu.matmul %30, %38, %cst_26 {dimension_numbers = #tpu.dot_dimension_numbers<[1], [0], [0], [1], [0, 0, 1, 1], [], []>} : vector<32x32xf32>, vector<32x32xf32>, vector<32x32xf32> -> vector<32x32xf32>
    %40 = arith.addf %36, %39 : vector<32x32xf32>
    %c1_27 = arith.constant 1 : index
    %c0_28 = arith.constant 0 : index
    %c0_29 = arith.constant 0 : index
    %41 = vector.load %arg5[%c1_27, %c0_28, %c0_29] : memref<7x1x32xf32, #tpu.memory_space<vmem>>, vector<1x1x32xf32>
    %42 = vector.shape_cast %41 : vector<1x1x32xf32> to vector<1x32xf32>
    %43 = vector.broadcast %42 : vector<1x32xf32> to vector<32x32xf32>
    %44 = arith.addf %40, %43 : vector<32x32xf32>
    %cst_30 = arith.constant 0.000000e+00 : f32
    %45 = vector.broadcast %cst_30 : f32 to vector<32x32xf32>
    %46 = arith.maximumf %44, %45 : vector<32x32xf32>
    %47 = arith.addf %46, %30 : vector<32x32xf32>
    %48 = vector.broadcast %11 : vector<32x1xf32> to vector<32x32xf32>
    %49 = arith.mulf %48, %47 : vector<32x32xf32>
    %cst_31 = arith.constant dense<0.000000e+00> : vector<32x32xf32>
    %50 = tpu.matmul %13, %49, %cst_31 {dimension_numbers = #tpu.dot_dimension_numbers<[1], [0], [0], [1], [0, 0, 1, 1], [], []>} : vector<32x32xf32>, vector<32x32xf32>, vector<32x32xf32> -> vector<32x32xf32>
    %c2 = arith.constant 2 : index
    %c0_32 = arith.constant 0 : index
    %c0_33 = arith.constant 0 : index
    %51 = vector.load %arg3[%c2, %c0_32, %c0_33] : memref<7x32x32xf32, #tpu.memory_space<vmem>>, vector<1x32x32xf32>
    %52 = vector.shape_cast %51 : vector<1x32x32xf32> to vector<32x32xf32>
    %cst_34 = arith.constant dense<0.000000e+00> : vector<32x32xf32>
    %53 = tpu.matmul %50, %52, %cst_34 {dimension_numbers = #tpu.dot_dimension_numbers<[1], [0], [0], [1], [0, 0, 1, 1], [], []>} : vector<32x32xf32>, vector<32x32xf32>, vector<32x32xf32> -> vector<32x32xf32>
    %c2_35 = arith.constant 2 : index
    %c0_36 = arith.constant 0 : index
    %c0_37 = arith.constant 0 : index
    %54 = vector.load %arg4[%c2_35, %c0_36, %c0_37] : memref<7x32x32xf32, #tpu.memory_space<vmem>>, vector<1x32x32xf32>
    %55 = vector.shape_cast %54 : vector<1x32x32xf32> to vector<32x32xf32>
    %cst_38 = arith.constant dense<0.000000e+00> : vector<32x32xf32>
    %56 = tpu.matmul %47, %55, %cst_38 {dimension_numbers = #tpu.dot_dimension_numbers<[1], [0], [0], [1], [0, 0, 1, 1], [], []>} : vector<32x32xf32>, vector<32x32xf32>, vector<32x32xf32> -> vector<32x32xf32>
    %57 = arith.addf %53, %56 : vector<32x32xf32>
    %c2_39 = arith.constant 2 : index
    %c0_40 = arith.constant 0 : index
    %c0_41 = arith.constant 0 : index
    %58 = vector.load %arg5[%c2_39, %c0_40, %c0_41] : memref<7x1x32xf32, #tpu.memory_space<vmem>>, vector<1x1x32xf32>
    %59 = vector.shape_cast %58 : vector<1x1x32xf32> to vector<1x32xf32>
    %60 = vector.broadcast %59 : vector<1x32xf32> to vector<32x32xf32>
    %61 = arith.addf %57, %60 : vector<32x32xf32>
    %cst_42 = arith.constant 0.000000e+00 : f32
    %62 = vector.broadcast %cst_42 : f32 to vector<32x32xf32>
    %63 = arith.maximumf %61, %62 : vector<32x32xf32>
    %64 = arith.addf %63, %47 : vector<32x32xf32>
    %65 = vector.broadcast %11 : vector<32x1xf32> to vector<32x32xf32>
    %66 = arith.mulf %65, %64 : vector<32x32xf32>
    %cst_43 = arith.constant dense<0.000000e+00> : vector<32x32xf32>
    %67 = tpu.matmul %13, %66, %cst_43 {dimension_numbers = #tpu.dot_dimension_numbers<[1], [0], [0], [1], [0, 0, 1, 1], [], []>} : vector<32x32xf32>, vector<32x32xf32>, vector<32x32xf32> -> vector<32x32xf32>
    %c3 = arith.constant 3 : index
    %c0_44 = arith.constant 0 : index
    %c0_45 = arith.constant 0 : index
    %68 = vector.load %arg3[%c3, %c0_44, %c0_45] : memref<7x32x32xf32, #tpu.memory_space<vmem>>, vector<1x32x32xf32>
    %69 = vector.shape_cast %68 : vector<1x32x32xf32> to vector<32x32xf32>
    %cst_46 = arith.constant dense<0.000000e+00> : vector<32x32xf32>
    %70 = tpu.matmul %67, %69, %cst_46 {dimension_numbers = #tpu.dot_dimension_numbers<[1], [0], [0], [1], [0, 0, 1, 1], [], []>} : vector<32x32xf32>, vector<32x32xf32>, vector<32x32xf32> -> vector<32x32xf32>
    %c3_47 = arith.constant 3 : index
    %c0_48 = arith.constant 0 : index
    %c0_49 = arith.constant 0 : index
    %71 = vector.load %arg4[%c3_47, %c0_48, %c0_49] : memref<7x32x32xf32, #tpu.memory_space<vmem>>, vector<1x32x32xf32>
    %72 = vector.shape_cast %71 : vector<1x32x32xf32> to vector<32x32xf32>
    %cst_50 = arith.constant dense<0.000000e+00> : vector<32x32xf32>
    %73 = tpu.matmul %64, %72, %cst_50 {dimension_numbers = #tpu.dot_dimension_numbers<[1], [0], [0], [1], [0, 0, 1, 1], [], []>} : vector<32x32xf32>, vector<32x32xf32>, vector<32x32xf32> -> vector<32x32xf32>
    %74 = arith.addf %70, %73 : vector<32x32xf32>
    %c3_51 = arith.constant 3 : index
    %c0_52 = arith.constant 0 : index
    %c0_53 = arith.constant 0 : index
    %75 = vector.load %arg5[%c3_51, %c0_52, %c0_53] : memref<7x1x32xf32, #tpu.memory_space<vmem>>, vector<1x1x32xf32>
    %76 = vector.shape_cast %75 : vector<1x1x32xf32> to vector<1x32xf32>
    %77 = vector.broadcast %76 : vector<1x32xf32> to vector<32x32xf32>
    %78 = arith.addf %74, %77 : vector<32x32xf32>
    %cst_54 = arith.constant 0.000000e+00 : f32
    %79 = vector.broadcast %cst_54 : f32 to vector<32x32xf32>
    %80 = arith.maximumf %78, %79 : vector<32x32xf32>
    %81 = arith.addf %80, %64 : vector<32x32xf32>
    %82 = vector.broadcast %11 : vector<32x1xf32> to vector<32x32xf32>
    %83 = arith.mulf %82, %81 : vector<32x32xf32>
    %cst_55 = arith.constant dense<0.000000e+00> : vector<32x32xf32>
    %84 = tpu.matmul %13, %83, %cst_55 {dimension_numbers = #tpu.dot_dimension_numbers<[1], [0], [0], [1], [0, 0, 1, 1], [], []>} : vector<32x32xf32>, vector<32x32xf32>, vector<32x32xf32> -> vector<32x32xf32>
    %c4 = arith.constant 4 : index
    %c0_56 = arith.constant 0 : index
    %c0_57 = arith.constant 0 : index
    %85 = vector.load %arg3[%c4, %c0_56, %c0_57] : memref<7x32x32xf32, #tpu.memory_space<vmem>>, vector<1x32x32xf32>
    %86 = vector.shape_cast %85 : vector<1x32x32xf32> to vector<32x32xf32>
    %cst_58 = arith.constant dense<0.000000e+00> : vector<32x32xf32>
    %87 = tpu.matmul %84, %86, %cst_58 {dimension_numbers = #tpu.dot_dimension_numbers<[1], [0], [0], [1], [0, 0, 1, 1], [], []>} : vector<32x32xf32>, vector<32x32xf32>, vector<32x32xf32> -> vector<32x32xf32>
    %c4_59 = arith.constant 4 : index
    %c0_60 = arith.constant 0 : index
    %c0_61 = arith.constant 0 : index
    %88 = vector.load %arg4[%c4_59, %c0_60, %c0_61] : memref<7x32x32xf32, #tpu.memory_space<vmem>>, vector<1x32x32xf32>
    %89 = vector.shape_cast %88 : vector<1x32x32xf32> to vector<32x32xf32>
    %cst_62 = arith.constant dense<0.000000e+00> : vector<32x32xf32>
    %90 = tpu.matmul %81, %89, %cst_62 {dimension_numbers = #tpu.dot_dimension_numbers<[1], [0], [0], [1], [0, 0, 1, 1], [], []>} : vector<32x32xf32>, vector<32x32xf32>, vector<32x32xf32> -> vector<32x32xf32>
    %91 = arith.addf %87, %90 : vector<32x32xf32>
    %c4_63 = arith.constant 4 : index
    %c0_64 = arith.constant 0 : index
    %c0_65 = arith.constant 0 : index
    %92 = vector.load %arg5[%c4_63, %c0_64, %c0_65] : memref<7x1x32xf32, #tpu.memory_space<vmem>>, vector<1x1x32xf32>
    %93 = vector.shape_cast %92 : vector<1x1x32xf32> to vector<1x32xf32>
    %94 = vector.broadcast %93 : vector<1x32xf32> to vector<32x32xf32>
    %95 = arith.addf %91, %94 : vector<32x32xf32>
    %cst_66 = arith.constant 0.000000e+00 : f32
    %96 = vector.broadcast %cst_66 : f32 to vector<32x32xf32>
    %97 = arith.maximumf %95, %96 : vector<32x32xf32>
    %98 = arith.addf %97, %81 : vector<32x32xf32>
    %99 = vector.broadcast %11 : vector<32x1xf32> to vector<32x32xf32>
    %100 = arith.mulf %99, %98 : vector<32x32xf32>
    %cst_67 = arith.constant dense<0.000000e+00> : vector<32x32xf32>
    %101 = tpu.matmul %13, %100, %cst_67 {dimension_numbers = #tpu.dot_dimension_numbers<[1], [0], [0], [1], [0, 0, 1, 1], [], []>} : vector<32x32xf32>, vector<32x32xf32>, vector<32x32xf32> -> vector<32x32xf32>
    %c5 = arith.constant 5 : index
    %c0_68 = arith.constant 0 : index
    %c0_69 = arith.constant 0 : index
    %102 = vector.load %arg3[%c5, %c0_68, %c0_69] : memref<7x32x32xf32, #tpu.memory_space<vmem>>, vector<1x32x32xf32>
    %103 = vector.shape_cast %102 : vector<1x32x32xf32> to vector<32x32xf32>
    %cst_70 = arith.constant dense<0.000000e+00> : vector<32x32xf32>
    %104 = tpu.matmul %101, %103, %cst_70 {dimension_numbers = #tpu.dot_dimension_numbers<[1], [0], [0], [1], [0, 0, 1, 1], [], []>} : vector<32x32xf32>, vector<32x32xf32>, vector<32x32xf32> -> vector<32x32xf32>
    %c5_71 = arith.constant 5 : index
    %c0_72 = arith.constant 0 : index
    %c0_73 = arith.constant 0 : index
    %105 = vector.load %arg4[%c5_71, %c0_72, %c0_73] : memref<7x32x32xf32, #tpu.memory_space<vmem>>, vector<1x32x32xf32>
    %106 = vector.shape_cast %105 : vector<1x32x32xf32> to vector<32x32xf32>
    %cst_74 = arith.constant dense<0.000000e+00> : vector<32x32xf32>
    %107 = tpu.matmul %98, %106, %cst_74 {dimension_numbers = #tpu.dot_dimension_numbers<[1], [0], [0], [1], [0, 0, 1, 1], [], []>} : vector<32x32xf32>, vector<32x32xf32>, vector<32x32xf32> -> vector<32x32xf32>
    %108 = arith.addf %104, %107 : vector<32x32xf32>
    %c5_75 = arith.constant 5 : index
    %c0_76 = arith.constant 0 : index
    %c0_77 = arith.constant 0 : index
    %109 = vector.load %arg5[%c5_75, %c0_76, %c0_77] : memref<7x1x32xf32, #tpu.memory_space<vmem>>, vector<1x1x32xf32>
    %110 = vector.shape_cast %109 : vector<1x1x32xf32> to vector<1x32xf32>
    %111 = vector.broadcast %110 : vector<1x32xf32> to vector<32x32xf32>
    %112 = arith.addf %108, %111 : vector<32x32xf32>
    %cst_78 = arith.constant 0.000000e+00 : f32
    %113 = vector.broadcast %cst_78 : f32 to vector<32x32xf32>
    %114 = arith.maximumf %112, %113 : vector<32x32xf32>
    %115 = arith.addf %114, %98 : vector<32x32xf32>
    %116 = vector.broadcast %11 : vector<32x1xf32> to vector<32x32xf32>
    %117 = arith.mulf %116, %115 : vector<32x32xf32>
    %cst_79 = arith.constant dense<0.000000e+00> : vector<32x32xf32>
    %118 = tpu.matmul %13, %117, %cst_79 {dimension_numbers = #tpu.dot_dimension_numbers<[1], [0], [0], [1], [0, 0, 1, 1], [], []>} : vector<32x32xf32>, vector<32x32xf32>, vector<32x32xf32> -> vector<32x32xf32>
    %c6 = arith.constant 6 : index
    %c0_80 = arith.constant 0 : index
    %c0_81 = arith.constant 0 : index
    %119 = vector.load %arg3[%c6, %c0_80, %c0_81] : memref<7x32x32xf32, #tpu.memory_space<vmem>>, vector<1x32x32xf32>
    %120 = vector.shape_cast %119 : vector<1x32x32xf32> to vector<32x32xf32>
    %cst_82 = arith.constant dense<0.000000e+00> : vector<32x32xf32>
    %121 = tpu.matmul %118, %120, %cst_82 {dimension_numbers = #tpu.dot_dimension_numbers<[1], [0], [0], [1], [0, 0, 1, 1], [], []>} : vector<32x32xf32>, vector<32x32xf32>, vector<32x32xf32> -> vector<32x32xf32>
    %c6_83 = arith.constant 6 : index
    %c0_84 = arith.constant 0 : index
    %c0_85 = arith.constant 0 : index
    %122 = vector.load %arg4[%c6_83, %c0_84, %c0_85] : memref<7x32x32xf32, #tpu.memory_space<vmem>>, vector<1x32x32xf32>
    %123 = vector.shape_cast %122 : vector<1x32x32xf32> to vector<32x32xf32>
    %cst_86 = arith.constant dense<0.000000e+00> : vector<32x32xf32>
    %124 = tpu.matmul %115, %123, %cst_86 {dimension_numbers = #tpu.dot_dimension_numbers<[1], [0], [0], [1], [0, 0, 1, 1], [], []>} : vector<32x32xf32>, vector<32x32xf32>, vector<32x32xf32> -> vector<32x32xf32>
    %125 = arith.addf %121, %124 : vector<32x32xf32>
    %c6_87 = arith.constant 6 : index
    %c0_88 = arith.constant 0 : index
    %c0_89 = arith.constant 0 : index
    %126 = vector.load %arg5[%c6_87, %c0_88, %c0_89] : memref<7x1x32xf32, #tpu.memory_space<vmem>>, vector<1x1x32xf32>
    %127 = vector.shape_cast %126 : vector<1x1x32xf32> to vector<1x32xf32>
    %128 = vector.broadcast %127 : vector<1x32xf32> to vector<32x32xf32>
    %129 = arith.addf %125, %128 : vector<32x32xf32>
    %cst_90 = arith.constant 0.000000e+00 : f32
    %130 = vector.broadcast %cst_90 : f32 to vector<32x32xf32>
    %131 = arith.maximumf %129, %130 : vector<32x32xf32>
    %132 = arith.addf %131, %115 : vector<32x32xf32>
    %c0_91 = arith.constant 0 : index
    %c0_92 = arith.constant 0 : index
    %133 = vector.load %arg6[%c0_91, %c0_92] : memref<32x32xf32, #tpu.memory_space<vmem>>, vector<32x32xf32>
    %cst_93 = arith.constant dense<0.000000e+00> : vector<32x32xf32>
    %134 = tpu.matmul %132, %133, %cst_93 {dimension_numbers = #tpu.dot_dimension_numbers<[1], [0], [0], [1], [0, 0, 1, 1], [], []>} : vector<32x32xf32>, vector<32x32xf32>, vector<32x32xf32> -> vector<32x32xf32>
    %c0_94 = arith.constant 0 : index
    %c0_95 = arith.constant 0 : index
    %135 = vector.load %arg7[%c0_94, %c0_95] : memref<1x32xf32, #tpu.memory_space<vmem>>, vector<1x32xf32>
    %136 = vector.broadcast %135 : vector<1x32xf32> to vector<32x32xf32>
    %137 = arith.addf %134, %136 : vector<32x32xf32>
    %c0_96 = arith.constant 0 : index
    %c0_97 = arith.constant 0 : index
    %c0_98 = arith.constant 0 : index
    %138 = vector.load %arg8[%c0_96, %c0_97, %c0_98] : memref<1x32x32xf32, #tpu.memory_space<vmem>>, vector<1x32x32xf32>
    %139 = vector.shape_cast %138 : vector<1x32x32xf32> to vector<32x32xf32>
    %140 = vector.shape_cast %137 : vector<32x32xf32> to vector<1x32x32xf32>
    tpu.vector_store %arg8[%c0_96, %c0_97, %c0_98], %140 {strides = array<i32>} : memref<1x32x32xf32, #tpu.memory_space<vmem>>, vector<1x32x32xf32>,
    return
  }
  func.func @transform_0(%arg0: i32) -> (i32, i32, i32) {
    %c0_i32 = arith.constant 0 : i32
    %c0_i32_0 = arith.constant 0 : i32
    %c0_i32_1 = arith.constant 0 : i32
    return %arg0, %c0_i32, %c0_i32_0 : i32, i32, i32
  }
  func.func @transform_1(%arg0: i32) -> (i32, i32, i32) {
    %c0_i32 = arith.constant 0 : i32
    %c0_i32_0 = arith.constant 0 : i32
    %c0_i32_1 = arith.constant 0 : i32
    return %arg0, %c0_i32, %c0_i32_0 : i32, i32, i32
  }
  func.func @transform_2(%arg0: i32) -> (i32, i32, i32) {
    %c0_i32 = arith.constant 0 : i32
    %c0_i32_0 = arith.constant 0 : i32
    %c0_i32_1 = arith.constant 0 : i32
    %c0_i32_2 = arith.constant 0 : i32
    return %c0_i32, %c0_i32_0, %c0_i32_1 : i32, i32, i32
  }
  func.func @transform_3(%arg0: i32) -> (i32, i32, i32) {
    %c0_i32 = arith.constant 0 : i32
    %c0_i32_0 = arith.constant 0 : i32
    %c0_i32_1 = arith.constant 0 : i32
    %c0_i32_2 = arith.constant 0 : i32
    return %c0_i32, %c0_i32_0, %c0_i32_1 : i32, i32, i32
  }
  func.func @transform_4(%arg0: i32) -> (i32, i32, i32) {
    %c0_i32 = arith.constant 0 : i32
    %c0_i32_0 = arith.constant 0 : i32
    %c0_i32_1 = arith.constant 0 : i32
    %c0_i32_2 = arith.constant 0 : i32
    return %c0_i32, %c0_i32_0, %c0_i32_1 : i32, i32, i32
  }
  func.func @transform_5(%arg0: i32) -> (i32, i32) {
    %c0_i32 = arith.constant 0 : i32
    %c0_i32_0 = arith.constant 0 : i32
    %c0_i32_1 = arith.constant 0 : i32
    return %c0_i32, %c0_i32_0 : i32, i32
  }
  func.func @transform_6(%arg0: i32) -> (i32, i32) {
    %c0_i32 = arith.constant 0 : i32
    %c0_i32_0 = arith.constant 0 : i32
    %c0_i32_1 = arith.constant 0 : i32
    return %c0_i32, %c0_i32_0 : i32, i32
  }
  func.func @transform_7(%arg0: i32) -> (i32, i32, i32) {
    %c0_i32 = arith.constant 0 : i32
    %c0_i32_0 = arith.constant 0 : i32
    %c0_i32_1 = arith.constant 0 : i32
    return %arg0, %c0_i32, %c0_i32_0 : i32, i32, i32
  }
}

</mosaic_0001>

<llo_original>
// kernel: net_prot_sage.1
$region0: #{net_prot_sage.1}
  #allocation0 [shape = 'u32[]', space=smem, size = 0x4, offset = 0x4, fixed_abs, tag = 'smem constant byte address 0x4 - core index']
  #allocation1 [shape = 'u32[144,128]{1,0:T(1,128)}', space=vmem, size = 0x12000, scoped, tag = 'internal scratch']
  %s0 = inlined_call_operand.vmem [shape: f32[2,32,32], index: 0, kind: input, shape index: {}]
  %s1 = inlined_call_operand.vmem [shape: f32[2,32,32], index: 1, kind: input, shape index: {}]
  %s2 = inlined_call_operand.vmem [shape: f32[7,32,32], index: 2, kind: input, shape index: {}]
  %s3 = inlined_call_operand.vmem [shape: f32[7,32,32], index: 3, kind: input, shape index: {}]
  %s4 = inlined_call_operand.vmem [shape: f32[7,1,32], index: 4, kind: input, shape index: {}]
  %s5 = inlined_call_operand.vmem [shape: f32[32,32], index: 5, kind: input, shape index: {}]
  %s6 = inlined_call_operand.vmem [shape: f32[1,32], index: 6, kind: input, shape index: {}]
  %s7 = inlined_call_operand.hbm [shape: f32[2,32,32], index: 7, kind: output, shape index: {}]
  %s8 = sld [smem:[#allocation0]]
  $region61: #{net_prot_sage.1} parent=0
    _
  %s10 = ssub.s32 1, %s8
  %s11 = scalar_select 0, %s10, %s8
  $region1: #{net_prot_sage.1} parent=0
    #allocation2 [shape = 'u8[32768]{0}', space=vmem, size = 0x8000, scoped, tag = 'output window, operand 0']
    #allocation3 [shape = 's32[2]{0}', space=sflag, size = 0x8, scoped, tag = 'scoped memory for net_prot_sage.1']
    %12 = vsyncpa [#allocation3], 0
    %s13 = scalar_lea.sflag [#allocation3], 1
    %14 = vsyncpa %s13, 0
    loop: start=0, step=1, limit=4
    $region2: #{net_prot_sage.1} parent=1 // loop_pre_header
      _
    $region3: #{net_prot_sage.1} parent=1 // loop_header
      %s16 = sphi 0, %s20
      %p17 = scmp.ge.s32.totalorder %s16, 4
      %s26 = sphi 0, %s28
      %s29 = sphi 0, %s26
      %s30 = sphi 0, %s29
      %s46 = sphi 0, %s30
      %s52 = sphi 0, %s54
      %s55 = sphi 0, %s52
      %s56 = sphi 0, %s55
      %s72 = sphi 0, %s56
      %s76 = sphi 0, %s76
      %s78 = sphi 0, %s76
      %s79 = sphi 0, %s78
      %s93 = sphi 0, %s79
      %s97 = sphi 0, %s97
      %s99 = sphi 0, %s97
      %s100 = sphi 0, %s99
      %s114 = sphi 0, %s100
      %s118 = sphi 0, %s118
      %s120 = sphi 0, %s118
      %s121 = sphi 0, %s120
      %s135 = sphi 0, %s121
      %s139 = sphi 0, %s139
      %s141 = sphi 0, %s139
      %s142 = sphi 0, %s141
      %s156 = sphi 0, %s142
      %s160 = sphi 0, %s160
      %s162 = sphi 0, %s160
      %s163 = sphi 0, %s162
      %s177 = sphi 0, %s163
      %s183 = sphi 0, %s185
      %s186 = sphi 0, %s183
      %s187 = sphi 0, %s186
      %s203 = sphi 0, %s187
    $region4: #{net_prot_sage.1} parent=1 // loop_header_branch
      %19 = sbr.rel (%p17) target = $region8
    $region5: #{net_prot_sage.1} parent=1 // loop_body
      %s21 = ssub.s32 %s16, 1
      %s22 = ssub.s32 %s16, 2
      %s23 = sadd.s32 %s16, 1
      %s24 = ssub.s32 %s16, %s23
      %p25 = scmp.eq.s32.totalorder %s24, 0
      %s27 = sadd.s32 %s26, 1
      %s28 = scalar_select %p25, %s26, %s27
      %p31 = pneg %p25
      %p32 = scmp.eq.s32.totalorder %s16, 1
      %p33 = por %p31, %p32
      %p34 = scmp.ne.s32.totalorder %s26, %s29
      %p35 = scmp.eq.s32.totalorder %s16, 0
      %p36 = por %p34, %p35
      %p37 = scmp.ne.s32.totalorder %s26, %s29
      %p38 = scmp.eq.s32.totalorder %s21, 1
      %p39 = por %p37, %p38
      %p40 = scmp.ne.s32.totalorder %s29, %s30
      %p41 = scmp.eq.s32.totalorder %s21, 0
      %p42 = por %p40, %p41
      %p43 = scmp.ne.s32.totalorder %s29, %s30
      %p44 = scmp.eq.s32.totalorder %s22, 1
      %p45 = por %p43, %p44
      %p47 = scmp.ne.s32.totalorder %s30, %s46
      %p48 = scmp.eq.s32.totalorder %s22, 0
      %p49 = por %p47, %p48
      %s50 = ssub.s32 %s16, %s23
      %p51 = scmp.eq.s32.totalorder %s50, 0
      %s53 = sadd.s32 %s52, 1
      %s54 = scalar_select %p51, %s52, %s53
      %p57 = pneg %p51
      %p58 = scmp.eq.s32.totalorder %s16, 1
      %p59 = por %p57, %p58
      %p60 = scmp.ne.s32.totalorder %s52, %s55
      %p61 = scmp.eq.s32.totalorder %s16, 0
      %p62 = por %p60, %p61
      %p63 = scmp.ne.s32.totalorder %s52, %s55
      %p64 = scmp.eq.s32.totalorder %s21, 1
      %p65 = por %p63, %p64
      %p66 = scmp.ne.s32.totalorder %s55, %s56
      %p67 = scmp.eq.s32.totalorder %s21, 0
      %p68 = por %p66, %p67
      %p69 = scmp.ne.s32.totalorder %s55, %s56
      %p70 = scmp.eq.s32.totalorder %s22, 1
      %p71 = por %p69, %p70
      %p73 = scmp.ne.s32.totalorder %s56, %s72
      %p74 = scmp.eq.s32.totalorder %s22, 0
      %p75 = por %p73, %p74
      %s77 = sadd.s32 %s76, 1
      %p80 = scmp.eq.s32.totalorder %s16, 1
      %p81 = scmp.ne.s32.totalorder %s76, %s78
      %p82 = scmp.eq.s32.totalorder %s16, 0
      %p83 = por %p81, %p82
      %p84 = scmp.ne.s32.totalorder %s76, %s78
      %p85 = scmp.eq.s32.totalorder %s21, 1
      %p86 = por %p84, %p85
      %p87 = scmp.ne.s32.totalorder %s78, %s79
      %p88 = scmp.eq.s32.totalorder %s21, 0
      %p89 = por %p87, %p88
      %p90 = scmp.ne.s32.totalorder %s78, %s79
      %p91 = scmp.eq.s32.totalorder %s22, 1
      %p92 = por %p90, %p91
      %p94 = scmp.ne.s32.totalorder %s79, %s93
      %p95 = scmp.eq.s32.totalorder %s22, 0
      %p96 = por %p94, %p95
      %s98 = sadd.s32 %s97, 1
      %p101 = scmp.eq.s32.totalorder %s16, 1
      %p102 = scmp.ne.s32.totalorder %s97, %s99
      %p103 = scmp.eq.s32.totalorder %s16, 0
      %p104 = por %p102, %p103
      %p105 = scmp.ne.s32.totalorder %s97, %s99
      %p106 = scmp.eq.s32.totalorder %s21, 1
      %p107 = por %p105, %p106
      %p108 = scmp.ne.s32.totalorder %s99, %s100
      %p109 = scmp.eq.s32.totalorder %s21, 0
      %p110 = por %p108, %p109
      %p111 = scmp.ne.s32.totalorder %s99, %s100
      %p112 = scmp.eq.s32.totalorder %s22, 1
      %p113 = por %p111, %p112
      %p115 = scmp.ne.s32.totalorder %s100, %s114
      %p116 = scmp.eq.s32.totalorder %s22, 0
      %p117 = por %p115, %p116
      %s119 = sadd.s32 %s118, 1
      %p122 = scmp.eq.s32.totalorder %s16, 1
      %p123 = scmp.ne.s32.totalorder %s118, %s120
      %p124 = scmp.eq.s32.totalorder %s16, 0
      %p125 = por %p123, %p124
      %p126 = scmp.ne.s32.totalorder %s118, %s120
      %p127 = scmp.eq.s32.totalorder %s21, 1
      %p128 = por %p126, %p127
      %p129 = scmp.ne.s32.totalorder %s120, %s121
      %p130 = scmp.eq.s32.totalorder %s21, 0
      %p131 = por %p129, %p130
      %p132 = scmp.ne.s32.totalorder %s120, %s121
      %p133 = scmp.eq.s32.totalorder %s22, 1
      %p134 = por %p132, %p133
      %p136 = scmp.ne.s32.totalorder %s121, %s135
      %p137 = scmp.eq.s32.totalorder %s22, 0
      %p138 = por %p136, %p137
      %s140 = sadd.s32 %s139, 1
      %p143 = scmp.eq.s32.totalorder %s16, 1
      %p144 = scmp.ne.s32.totalorder %s139, %s141
      %p145 = scmp.eq.s32.totalorder %s16, 0
      %p146 = por %p144, %p145
      %p147 = scmp.ne.s32.totalorder %s139, %s141
      %p148 = scmp.eq.s32.totalorder %s21, 1
      %p149 = por %p147, %p148
      %p150 = scmp.ne.s32.totalorder %s141, %s142
      %p151 = scmp.eq.s32.totalorder %s21, 0
      %p152 = por %p150, %p151
      %p153 = scmp.ne.s32.totalorder %s141, %s142
      %p154 = scmp.eq.s32.totalorder %s22, 1
      %p155 = por %p153, %p154
      %p157 = scmp.ne.s32.totalorder %s142, %s156
      %p158 = scmp.eq.s32.totalorder %s22, 0
      %p159 = por %p157, %p158
      %s161 = sadd.s32 %s160, 1
      %p164 = scmp.eq.s32.totalorder %s16, 1
      %p165 = scmp.ne.s32.totalorder %s160, %s162
      %p166 = scmp.eq.s32.totalorder %s16, 0
      %p167 = por %p165, %p166
      %p168 = scmp.ne.s32.totalorder %s160, %s162
      %p169 = scmp.eq.s32.totalorder %s21, 1
      %p170 = por %p168, %p169
      %p171 = scmp.ne.s32.totalorder %s162, %s163
      %p172 = scmp.eq.s32.totalorder %s21, 0
      %p173 = por %p171, %p172
      %p174 = scmp.ne.s32.totalorder %s162, %s163
      %p175 = scmp.eq.s32.totalorder %s22, 1
      %p176 = por %p174, %p175
      %p178 = scmp.ne.s32.totalorder %s163, %s177
      %p179 = scmp.eq.s32.totalorder %s22, 0
      %p180 = por %p178, %p179
      %s181 = ssub.s32 %s16, %s23
      %p182 = scmp.eq.s32.totalorder %s181, 0
      %s184 = sadd.s32 %s183, 1
      %s185 = scalar_select %p182, %s183, %s184
      %p188 = pneg %p182
      %p189 = scmp.eq.s32.totalorder %s16, 1
      %p190 = por %p188, %p189
      %p191 = scmp.ne.s32.totalorder %s183, %s186
      %p192 = scmp.eq.s32.totalorder %s16, 0
      %p193 = por %p191, %p192
      %p194 = scmp.ne.s32.totalorder %s183, %s186
      %p195 = scmp.eq.s32.totalorder %s21, 1
      %p196 = por %p194, %p195
      %p197 = scmp.ne.s32.totalorder %s186, %s187
      %p198 = scmp.eq.s32.totalorder %s21, 0
      %p199 = por %p197, %p198
      %p200 = scmp.ne.s32.totalorder %s186, %s187
      %p201 = scmp.eq.s32.totalorder %s22, 1
      %p202 = por %p200, %p201
      %p204 = scmp.ne.s32.totalorder %s187, %s203
      %p205 = scmp.eq.s32.totalorder %s22, 0
      %p206 = por %p204, %p205
      %p207 = scmp.le.s32.totalorder 1, %s16
      %p208 = scmp.lt.s32.totalorder %s16, 3
      %p209 = pnand %p207, %p208
      %p210 = pneg %p209
      // Predicated region
      $region9: #{net_prot_sage.1} parent=5 // pred_check
        _
      $region10: #{net_prot_sage.1} parent=5 // pred_check_branch
        %212 = sbr.rel (%p209) target = $region12
      $region11: #{net_prot_sage.1} parent=5 // pred_region
        %s213 = ssub.s32 %s16, 1
        // Predicated region
        $region13: #{net_prot_sage.1} parent=11 // pred_check
          %p214 = pneg %p89
        $region14: #{net_prot_sage.1} parent=11 // pred_check_branch
          %216 = sbr.rel (%p214) target = $region16
        $region15: #{net_prot_sage.1} parent=11 // pred_region
          _
        $region16: #{net_prot_sage.1} parent=11 // pred_fallthru
          _
        // Predicated region
        $region17: #{net_prot_sage.1} parent=11 // pred_check
          %p217 = pneg %p110
        $region18: #{net_prot_sage.1} parent=11 // pred_check_branch
          %219 = sbr.rel (%p217) target = $region20
        $region19: #{net_prot_sage.1} parent=11 // pred_region
          _
        $region20: #{net_prot_sage.1} parent=11 // pred_fallthru
          _
        // Predicated region
        $region21: #{net_prot_sage.1} parent=11 // pred_check
          %p220 = pneg %p131
        $region22: #{net_prot_sage.1} parent=11 // pred_check_branch
          %222 = sbr.rel (%p220) target = $region24
        $region23: #{net_prot_sage.1} parent=11 // pred_region
          _
        $region24: #{net_prot_sage.1} parent=11 // pred_fallthru
          _
        // Predicated region
        $region25: #{net_prot_sage.1} parent=11 // pred_check
          %p223 = pneg %p152
        $region26: #{net_prot_sage.1} parent=11 // pred_check_branch
          %225 = sbr.rel (%p223) target = $region28
        $region27: #{net_prot_sage.1} parent=11 // pred_region
          _
        $region28: #{net_prot_sage.1} parent=11 // pred_fallthru
          _
        // Predicated region
        $region29: #{net_prot_sage.1} parent=11 // pred_check
          %p226 = pneg %p173
        $region30: #{net_prot_sage.1} parent=11 // pred_check_branch
          %228 = sbr.rel (%p226) target = $region32
        $region31: #{net_prot_sage.1} parent=11 // pred_region
          _
        $region32: #{net_prot_sage.1} parent=11 // pred_fallthru
          _
      $region12: #{net_prot_sage.1} parent=5 // pred_fallthru
        _
      %p229 = scmp.lt.s32.totalorder %s16, 2
      // Predicated region
      $region33: #{net_prot_sage.1} parent=5 // pred_check
        %p230 = pneg %p229
      $region34: #{net_prot_sage.1} parent=5 // pred_check_branch
        %232 = sbr.rel (%p230) target = $region36
      $region35: #{net_prot_sage.1} parent=5 // pred_region
        // Predicated region
        $region37: #{net_prot_sage.1} parent=35 // pred_check
          %p233 = pneg %p36
        $region38: #{net_prot_sage.1} parent=35 // pred_check_branch
          %235 = sbr.rel (%p233) target = $region40
        $region39: #{net_prot_sage.1} parent=35 // pred_region
          %p236 = scmp.lt.s32.totalorder %s16, 1
          %s237 = scalar_select %p236, %s16, 1
          %s238 = smul.addr %s237, 4
          %s239 = smul.addr %s238, 8
          %s240 = scalar_lea.vmem %s0, %s239
        $region40: #{net_prot_sage.1} parent=35 // pred_fallthru
          _
        // Predicated region
        $region41: #{net_prot_sage.1} parent=35 // pred_check
          %p241 = pneg %p62
        $region42: #{net_prot_sage.1} parent=35 // pred_check_branch
          %243 = sbr.rel (%p241) target = $region44
        $region43: #{net_prot_sage.1} parent=35 // pred_region
          %p244 = scmp.lt.s32.totalorder %s16, 1
          %s245 = scalar_select %p244, %s16, 1
          %s246 = smul.addr %s245, 4
          %s247 = smul.addr %s246, 8
          %s248 = scalar_lea.vmem %s1, %s247
        $region44: #{net_prot_sage.1} parent=35 // pred_fallthru
          _
      $region36: #{net_prot_sage.1} parent=5 // pred_fallthru
        _
      %p249 = scmp.le.s32.totalorder 1, %s16
      %p250 = scmp.lt.s32.totalorder %s16, 3
      %p251 = pnand %p249, %p250
      %p252 = pneg %p251
      // Predicated region
      $region45: #{net_prot_sage.1} parent=5 // pred_check
        _
      $region46: #{net_prot_sage.1} parent=5 // pred_check_branch
        %254 = sbr.rel (%p251) target = $region48
      $region47: #{net_prot_sage.1} parent=5 // pred_region
        %s255 = ssub.s32 %s16, 1
        %p256 = scmp.lt.s32.totalorder %s21, 1
        %s257 = scalar_select %p256, %s21, 1
        %s258 = smul.addr %s257, 4
        %s259 = smul.addr %s258, 8
        %s260 = scalar_lea.vmem %s0, %s259
        %p261 = pneg %p42
        %p262 = pneg %p39
        %p263 = scmp.lt.s32.totalorder %s21, 1
        %s264 = scalar_select %p263, %s21, 1
        %s265 = smul.addr %s264, 4
        %s266 = smul.addr %s265, 8
        %s267 = scalar_lea.vmem %s1, %s266
        %p268 = pneg %p68
        %p269 = pneg %p65
        %p270 = pneg %p89
        %p271 = pneg %p86
        %p272 = pneg %p110
        %p273 = pneg %p107
        %p274 = pneg %p131
        %p275 = pneg %p128
        %p276 = pneg %p152
        %p277 = pneg %p149
        %p278 = pneg %p173
        %p279 = pneg %p170
        %p280 = pneg %p199
        %p281 = pneg %p196
        %s282 = sand.u32 %s186, 1
        %s283 = scalar_lea.sflag [#allocation3], %s282
        %s284 = sand.u32 %s186, 1
        %s285 = smul.addr %s284, 32
        %s286 = scalar_lea.vmem [#allocation2], %s285
        %p287 = scmp.lt.s32.totalorder %s21, 1
        %s288 = scalar_select %p287, %s21, 1
        %s289 = smul.addr %s288, 4
        %s290 = smul.addr %s289, 8
        %s291 = scalar_lea.vmem %s0, %s290
        %p292 = scmp.lt.s32.totalorder %s21, 1
        %s293 = scalar_select %p292, %s21, 1
        %s294 = smul.addr %s293, 4
        %s295 = smul.addr %s294, 8
        %s296 = scalar_lea.vmem %s1, %s295
        %v297 = vld [vmem:[%s291] sm:$0xff]
        %v298 = vld [vmem:[%s291 + $0x8] sm:$0xff]
        %v299 = vld [vmem:[%s291 + $0x10] sm:$0xff]
        %v300 = vld [vmem:[%s291 + $0x18] sm:$0xff]
        %v301 = vld [vmem:[%s296] sm:$0xff]
        %v302 = vld [vmem:[%s296 + $0x8] sm:$0xff]
        %v303 = vld [vmem:[%s296 + $0x10] sm:$0xff]
        %v304 = vld [vmem:[%s296 + $0x18] sm:$0xff]
        %v305 = vlaneseq
        %v306 = vshrl.u32 %v305, 7
        %v307 = vadd.s32 %v306, 8
        %v308 = vadd.s32 %v306, 16
        %v309 = vadd.s32 %v306, 24
        %v310 = vlaneseq
        %v311 = vand.u32 %v310, 127
        %vm312 = vcmp.eq.s32.totalorder %v306, %v311
        %vm313 = vcmp.eq.s32.totalorder %v307, %v311
        %vm314 = vcmp.eq.s32.totalorder %v308, %v311
        %vm315 = vcmp.eq.s32.totalorder %v309, %v311
        %v316 = vsel %vm312, 1.0, %v301
        %v317 = vsel %vm313, 1.0, %v302
        %v318 = vsel %vm314, 1.0, %v303
        %v319 = vsel %vm315, 1.0, %v304
        %vm320 = vcmask 261120
        %v321 = vsel %vm320, %v316, 0.0
        %322 = vadd.xlane.f32.xlu0 %v321
        %v323 = vpop.xlane.xlu0 %322
        %v324 = vsel %vm320, %v317, 0.0
        %325 = vadd.xlane.f32.xlu0 %v324
        %v326 = vpop.xlane.xlu0 %325
        %v327 = vsel %vm320, %v318, 0.0
        %328 = vadd.xlane.f32.xlu0 %v327
        %v329 = vpop.xlane.xlu0 %328
        %v330 = vsel %vm320, %v319, 0.0
        %331 = vadd.xlane.f32.xlu0 %v330
        %v332 = vpop.xlane.xlu0 %331
        %v333 = vrsqrt.pop %v323
        %v334 = vrsqrt.pop %v326
        %v335 = vrsqrt.pop %v329
        %v336 = vrsqrt.pop %v332
        %v337 = vmul.f32 %v333, %v316
        %v338 = vmul.f32 %v334, %v317
        %v339 = vmul.f32 %v335, %v318
        %v340 = vmul.f32 %v336, %v319
        %v341 = vmul.f32 %v333, %v297
        %v342 = vmul.f32 %v334, %v298
        %v343 = vmul.f32 %v335, %v299
        %v344 = vmul.f32 %v336, %v300
        %v346 = vsel %vm320, %v337, 0
        %v349 = vsel %vm320, %v338, 0
        %v352 = vsel %vm320, %v339, 0
        %v355 = vsel %vm320, %v340, 0
        %357 = vmatprep.subr.mxu0 0.0
        %358 = vmatpush1.msra.mxu0 0.0
        %359 = vmatprep.subr.mxu0 0.0
        %360 = vmatpush1.msra.mxu0 0.0
        %361 = vmatprep.subr.mxu0 0.0
        %362 = vmatpush1.msra.mxu0 0.0
        %363 = vmatprep.subr.mxu0 0.0
        %364 = vmatpush1.msra.mxu0 0.0
        %365 = vmatprep.subr.mxu0 0.0
        %366 = vmatpush1.msra.mxu0 0.0
        %367 = vmatprep.subr.mxu0 0.0
        %368 = vmatpush1.msra.mxu0 0.0
        %369 = vmatprep.subr.mxu0 0.0
        %370 = vmatpush1.msra.mxu0 0.0
        %371 = vmatprep.subr.mxu0 0.0
        %372 = vmatpush1.msra.mxu0 0.0
        %373 = vmatprep.subr.mxu0 0.0
        %374 = vmatpush1.msra.mxu0 0.0
        %375 = vmatprep.subr.mxu0 0.0
        %376 = vmatpush1.msra.mxu0 0.0
        %377 = vmatprep.subr.mxu0 0.0
        %378 = vmatpush1.msra.mxu0 0.0
        %379 = vmatprep.subr.mxu0 0.0
        %380 = vmatpush1.msra.mxu0 0.0
        %381 = vmatprep.subr.mxu0 0.0
        %382 = vmatpush1.msra.mxu0 %v344
        %383 = vmatprep.subr.mxu0 0.0
        %384 = vmatpush1.msra.mxu0 %v343
        %385 = vmatprep.subr.mxu0 0.0
        %386 = vmatpush1.msra.mxu0 %v342
        %387 = vmatprep.subr.mxu0 0.0
        %388 = vmatpush1.msra.mxu0 %v341
        %389 = vmatprep.subr.mxu0 0.0
        %390 = vmatpush2.msra.mxu0 0.0
        %391 = vmatprep.subr.mxu0 0.0
        %392 = vmatpush2.msra.mxu0 0.0
        %393 = vmatprep.subr.mxu0 0.0
        %394 = vmatpush2.msra.mxu0 0.0
        %395 = vmatprep.subr.mxu0 0.0
        %396 = vmatpush2.msra.mxu0 0.0
        %397 = vmatprep.subr.mxu0 0.0
        %398 = vmatpush2.msra.mxu0 0.0
        %399 = vmatprep.subr.mxu0 0.0
        %400 = vmatpush2.msra.mxu0 0.0
        %401 = vmatprep.subr.mxu0 0.0
        %402 = vmatpush2.msra.mxu0 0.0
        %403 = vmatprep.subr.mxu0 0.0
        %404 = vmatpush2.msra.mxu0 0.0
        %405 = vmatprep.subr.mxu0 0.0
        %406 = vmatpush2.msra.mxu0 0.0
        %407 = vmatprep.subr.mxu0 0.0
        %408 = vmatpush2.msra.mxu0 0.0
        %409 = vmatprep.subr.mxu0 0.0
        %410 = vmatpush2.msra.mxu0 0.0
        %411 = vmatprep.subr.mxu0 0.0
        %412 = vmatpush2.msra.mxu0 0.0
        %413 = vmatprep.subr.mxu0 0.0
        %414 = vmatpush2.msra.mxu0 0.0
        %415 = vmatprep.subr.mxu0 0.0
        %416 = vmatpush2.msra.mxu0 0.0
        %417 = vmatprep.subr.mxu0 0.0
        %418 = vmatpush2.msra.mxu0 0.0
        %419 = vmatprep.subr.mxu0 0.0
        %420 = vmatpush2.msra.mxu0 0.0
        %421 = vmatprep.mubr.f32.mxu0 0.0
        %422 = vmatmul.mubr.f32.gmra.mxu0 %v346
        %v423 = vpop.f32.mrf.mxu0
        %v424 = vadd.f32 0.0, %v423
        %v425 = vpop.f32.mrf.mxu0
        %426 = vmatprep.mubr.f32.mxu0 0.0
        %427 = vmatmul.mubr.f32.gmra.mxu0 %v349
        %v428 = vpop.f32.mrf.mxu0
        %v429 = vadd.f32 0.0, %v428
        %v430 = vpop.f32.mrf.mxu0
        %431 = vmatprep.mubr.f32.mxu0 0.0
        %432 = vmatmul.mubr.f32.gmra.mxu0 %v352
        %v433 = vpop.f32.mrf.mxu0
        %v434 = vadd.f32 0.0, %v433
        %v435 = vpop.f32.mrf.mxu0
        %436 = vmatprep.mubr.f32.mxu0 0.0
        %437 = vmatmul.mubr.f32.gmra.mxu0 %v355
        %v438 = vpop.f32.mrf.mxu0
        %v439 = vadd.f32 0.0, %v438
        %v440 = vpop.f32.mrf.mxu0
        %441 = vdwg.mxu0
        %v442 = vld [vmem:[%s2] sm:$0xff]
        %v443 = vld [vmem:[%s2 + $0x8] sm:$0xff]
        %v444 = vld [vmem:[%s2 + $0x10] sm:$0xff]
        %v445 = vld [vmem:[%s2 + $0x18] sm:$0xff]
        %v446 = vld [vmem:[%s3] sm:$0xff]
        %v447 = vld [vmem:[%s3 + $0x8] sm:$0xff]
        %v448 = vld [vmem:[%s3 + $0x10] sm:$0xff]
        %v449 = vld [vmem:[%s3 + $0x18] sm:$0xff]
        %v451 = vsel %vm320, %v297, 0
        %v454 = vsel %vm320, %v298, 0
        %v457 = vsel %vm320, %v299, 0
        %v460 = vsel %vm320, %v300, 0
        %462 = vmatprep.subr.mxu0 0.0
        %463 = vmatpush1.msra.mxu0 0.0
        %464 = vmatprep.subr.mxu0 0.0
        %465 = vmatpush1.msra.mxu0 0.0
        %466 = vmatprep.subr.mxu0 0.0
        %467 = vmatpush1.msra.mxu0 0.0
        %468 = vmatprep.subr.mxu0 0.0
        %469 = vmatpush1.msra.mxu0 0.0
        %470 = vmatprep.subr.mxu0 0.0
        %471 = vmatpush1.msra.mxu0 0.0
        %472 = vmatprep.subr.mxu0 0.0
        %473 = vmatpush1.msra.mxu0 0.0
        %474 = vmatprep.subr.mxu0 0.0
        %475 = vmatpush1.msra.mxu0 0.0
        %476 = vmatprep.subr.mxu0 0.0
        %477 = vmatpush1.msra.mxu0 0.0
        %478 = vmatprep.subr.mxu0 0.0
        %479 = vmatpush1.msra.mxu0 0.0
        %480 = vmatprep.subr.mxu0 0.0
        %481 = vmatpush1.msra.mxu0 0.0
        %482 = vmatprep.subr.mxu0 0.0
        %483 = vmatpush1.msra.mxu0 0.0
        %484 = vmatprep.subr.mxu0 0.0
        %485 = vmatpush1.msra.mxu0 0.0
        %486 = vmatprep.subr.mxu0 0.0
        %487 = vmatpush1.msra.mxu0 %v449
        %488 = vmatprep.subr.mxu0 0.0
        %489 = vmatpush1.msra.mxu0 %v448
        %490 = vmatprep.subr.mxu0 0.0
        %491 = vmatpush1.msra.mxu0 %v447
        %492 = vmatprep.subr.mxu0 0.0
        %493 = vmatpush1.msra.mxu0 %v446
        %494 = vmatprep.subr.mxu0 0.0
        %495 = vmatpush2.msra.mxu0 0.0
        %496 = vmatprep.subr.mxu0 0.0
        %497 = vmatpush2.msra.mxu0 0.0
        %498 = vmatprep.subr.mxu0 0.0
        %499 = vmatpush2.msra.mxu0 0.0
        %500 = vmatprep.subr.mxu0 0.0
        %501 = vmatpush2.msra.mxu0 0.0
        %502 = vmatprep.subr.mxu0 0.0
        %503 = vmatpush2.msra.mxu0 0.0
        %504 = vmatprep.subr.mxu0 0.0
        %505 = vmatpush2.msra.mxu0 0.0
        %506 = vmatprep.subr.mxu0 0.0
        %507 = vmatpush2.msra.mxu0 0.0
        %508 = vmatprep.subr.mxu0 0.0
        %509 = vmatpush2.msra.mxu0 0.0
        %510 = vmatprep.subr.mxu0 0.0
        %511 = vmatpush2.msra.mxu0 0.0
        %512 = vmatprep.subr.mxu0 0.0
        %513 = vmatpush2.msra.mxu0 0.0
        %514 = vmatprep.subr.mxu0 0.0
        %515 = vmatpush2.msra.mxu0 0.0
        %516 = vmatprep.subr.mxu0 0.0
        %517 = vmatpush2.msra.mxu0 0.0
        %518 = vmatprep.subr.mxu0 0.0
        %519 = vmatpush2.msra.mxu0 0.0
        %520 = vmatprep.subr.mxu0 0.0
        %521 = vmatpush2.msra.mxu0 0.0
        %522 = vmatprep.subr.mxu0 0.0
        %523 = vmatpush2.msra.mxu0 0.0
        %524 = vmatprep.subr.mxu0 0.0
        %525 = vmatpush2.msra.mxu0 0.0
        %526 = vmatprep.mubr.f32.mxu0 0.0
        %527 = vmatmul.mubr.f32.gmra.mxu0 %v451
        %v528 = vpop.f32.mrf.mxu0
        %v529 = vadd.f32 0.0, %v528
        %v530 = vpop.f32.mrf.mxu0
        %531 = vmatprep.mubr.f32.mxu0 0.0
        %532 = vmatmul.mubr.f32.gmra.mxu0 %v454
        %v533 = vpop.f32.mrf.mxu0
        %v534 = vadd.f32 0.0, %v533
        %v535 = vpop.f32.mrf.mxu0
        %536 = vmatprep.mubr.f32.mxu0 0.0
        %537 = vmatmul.mubr.f32.gmra.mxu0 %v457
        %v538 = vpop.f32.mrf.mxu0
        %v539 = vadd.f32 0.0, %v538
        %v540 = vpop.f32.mrf.mxu0
        %541 = vmatprep.mubr.f32.mxu0 0.0
        %542 = vmatmul.mubr.f32.gmra.mxu0 %v460
        %v543 = vpop.f32.mrf.mxu0
        %v544 = vadd.f32 0.0, %v543
        %v545 = vpop.f32.mrf.mxu0
        %546 = vdwg.mxu0
        %v548 = vsel %vm320, %v424, 0
        %v551 = vsel %vm320, %v429, 0
        %v554 = vsel %vm320, %v434, 0
        %v557 = vsel %vm320, %v439, 0
        %559 = vmatprep.subr.mxu0 0.0
        %560 = vmatpush1.msra.mxu0 0.0
        %561 = vmatprep.subr.mxu0 0.0
        %562 = vmatpush1.msra.mxu0 0.0
        %563 = vmatprep.subr.mxu0 0.0
        %564 = vmatpush1.msra.mxu0 0.0
        %565 = vmatprep.subr.mxu0 0.0
        %566 = vmatpush1.msra.mxu0 0.0
        %567 = vmatprep.subr.mxu0 0.0
        %568 = vmatpush1.msra.mxu0 0.0
        %569 = vmatprep.subr.mxu0 0.0
        %570 = vmatpush1.msra.mxu0 0.0
        %571 = vmatprep.subr.mxu0 0.0
        %572 = vmatpush1.msra.mxu0 0.0
        %573 = vmatprep.subr.mxu0 0.0
        %574 = vmatpush1.msra.mxu0 0.0
        %575 = vmatprep.subr.mxu0 0.0
        %576 = vmatpush1.msra.mxu0 0.0
        %577 = vmatprep.subr.mxu0 0.0
        %578 = vmatpush1.msra.mxu0 0.0
        %579 = vmatprep.subr.mxu0 0.0
        %580 = vmatpush1.msra.mxu0 0.0
        %581 = vmatprep.subr.mxu0 0.0
        %582 = vmatpush1.msra.mxu0 0.0
        %583 = vmatprep.subr.mxu0 0.0
        %584 = vmatpush1.msra.mxu0 %v445
        %585 = vmatprep.subr.mxu0 0.0
        %586 = vmatpush1.msra.mxu0 %v444
        %587 = vmatprep.subr.mxu0 0.0
        %588 = vmatpush1.msra.mxu0 %v443
        %589 = vmatprep.subr.mxu0 0.0
        %590 = vmatpush1.msra.mxu0 %v442
        %591 = vmatprep.subr.mxu0 0.0
        %592 = vmatpush2.msra.mxu0 0.0
        %593 = vmatprep.subr.mxu0 0.0
        %594 = vmatpush2.msra.mxu0 0.0
        %595 = vmatprep.subr.mxu0 0.0
        %596 = vmatpush2.msra.mxu0 0.0
        %597 = vmatprep.subr.mxu0 0.0
        %598 = vmatpush2.msra.mxu0 0.0
        %599 = vmatprep.subr.mxu0 0.0
        %600 = vmatpush2.msra.mxu0 0.0
        %601 = vmatprep.subr.mxu0 0.0
        %602 = vmatpush2.msra.mxu0 0.0
        %603 = vmatprep.subr.mxu0 0.0
        %604 = vmatpush2.msra.mxu0 0.0
        %605 = vmatprep.subr.mxu0 0.0
        %606 = vmatpush2.msra.mxu0 0.0
        %607 = vmatprep.subr.mxu0 0.0
        %608 = vmatpush2.msra.mxu0 0.0
        %609 = vmatprep.subr.mxu0 0.0
        %610 = vmatpush2.msra.mxu0 0.0
        %611 = vmatprep.subr.mxu0 0.0
        %612 = vmatpush2.msra.mxu0 0.0
        %613 = vmatprep.subr.mxu0 0.0
        %614 = vmatpush2.msra.mxu0 0.0
        %615 = vmatprep.subr.mxu0 0.0
        %616 = vmatpush2.msra.mxu0 0.0
        %617 = vmatprep.subr.mxu0 0.0
        %618 = vmatpush2.msra.mxu0 0.0
        %619 = vmatprep.subr.mxu0 0.0
        %620 = vmatpush2.msra.mxu0 0.0
        %621 = vmatprep.subr.mxu0 0.0
        %622 = vmatpush2.msra.mxu0 0.0
        %623 = vmatprep.mubr.f32.mxu0 0.0
        %624 = vmatmul.mubr.f32.gmra.mxu0 %v548
        %v625 = vpop.f32.mrf.mxu0
        %v626 = vadd.f32 %v529, %v625
        %v627 = vpop.f32.mrf.mxu0
        %628 = vmatprep.mubr.f32.mxu0 0.0
        %629 = vmatmul.mubr.f32.gmra.mxu0 %v551
        %v630 = vpop.f32.mrf.mxu0
        %v631 = vadd.f32 %v534, %v630
        %v632 = vpop.f32.mrf.mxu0
        %633 = vmatprep.mubr.f32.mxu0 0.0
        %634 = vmatmul.mubr.f32.gmra.mxu0 %v554
        %v635 = vpop.f32.mrf.mxu0
        %v636 = vadd.f32 %v539, %v635
        %v637 = vpop.f32.mrf.mxu0
        %638 = vmatprep.mubr.f32.mxu0 0.0
        %639 = vmatmul.mubr.f32.gmra.mxu0 %v557
        %v640 = vpop.f32.mrf.mxu0
        %v641 = vadd.f32 %v544, %v640
        %v642 = vpop.f32.mrf.mxu0
        %643 = vdwg.mxu0
        %v644 = vld [vmem:[%s4] sm:$0x1]
        %v646 = vlaneseq
        %v647 = vshrl.u32 %v646, 7
        %v648 = vsub.s32 0, %v647
        %v649 = vrot.slane %v644, %v648
        %v651 = vadd.f32 %v626, %v649
        %v652 = vadd.f32 %v631, %v649
        %v653 = vadd.f32 %v636, %v649
        %v654 = vadd.f32 %v641, %v649
        %v655 = vmax.f32 %v651, 0.0
        %v656 = vmax.f32 %v652, 0.0
        %v657 = vmax.f32 %v653, 0.0
        %v658 = vmax.f32 %v654, 0.0
        %v659 = vadd.f32 %v655, %v297
        %v660 = vadd.f32 %v656, %v298
        %v661 = vadd.f32 %v657, %v299
        %v662 = vadd.f32 %v658, %v300
        %v663 = vmul.f32 %v333, %v659
        %v664 = vmul.f32 %v334, %v660
        %v665 = vmul.f32 %v335, %v661
        %v666 = vmul.f32 %v336, %v662
        %667 = vmatprep.subr.mxu0 0.0
        %668 = vmatpush1.msra.mxu0 0.0
        %669 = vmatprep.subr.mxu0 0.0
        %670 = vmatpush1.msra.mxu0 0.0
        %671 = vmatprep.subr.mxu0 0.0
        %672 = vmatpush1.msra.mxu0 0.0
        %673 = vmatprep.subr.mxu0 0.0
        %674 = vmatpush1.msra.mxu0 0.0
        %675 = vmatprep.subr.mxu0 0.0
        %676 = vmatpush1.msra.mxu0 0.0
        %677 = vmatprep.subr.mxu0 0.0
        %678 = vmatpush1.msra.mxu0 0.0
        %679 = vmatprep.subr.mxu0 0.0
        %680 = vmatpush1.msra.mxu0 0.0
        %681 = vmatprep.subr.mxu0 0.0
        %682 = vmatpush1.msra.mxu0 0.0
        %683 = vmatprep.subr.mxu0 0.0
        %684 = vmatpush1.msra.mxu0 0.0
        %685 = vmatprep.subr.mxu0 0.0
        %686 = vmatpush1.msra.mxu0 0.0
        %687 = vmatprep.subr.mxu0 0.0
        %688 = vmatpush1.msra.mxu0 0.0
        %689 = vmatprep.subr.mxu0 0.0
        %690 = vmatpush1.msra.mxu0 0.0
        %691 = vmatprep.subr.mxu0 0.0
        %692 = vmatpush1.msra.mxu0 %v666
        %693 = vmatprep.subr.mxu0 0.0
        %694 = vmatpush1.msra.mxu0 %v665
        %695 = vmatprep.subr.mxu0 0.0
        %696 = vmatpush1.msra.mxu0 %v664
        %697 = vmatprep.subr.mxu0 0.0
        %698 = vmatpush1.msra.mxu0 %v663
        %699 = vmatprep.subr.mxu0 0.0
        %700 = vmatpush2.msra.mxu0 0.0
        %701 = vmatprep.subr.mxu0 0.0
        %702 = vmatpush2.msra.mxu0 0.0
        %703 = vmatprep.subr.mxu0 0.0
        %704 = vmatpush2.msra.mxu0 0.0
        %705 = vmatprep.subr.mxu0 0.0
        %706 = vmatpush2.msra.mxu0 0.0
        %707 = vmatprep.subr.mxu0 0.0
        %708 = vmatpush2.msra.mxu0 0.0
        %709 = vmatprep.subr.mxu0 0.0
        %710 = vmatpush2.msra.mxu0 0.0
        %711 = vmatprep.subr.mxu0 0.0
        %712 = vmatpush2.msra.mxu0 0.0
        %713 = vmatprep.subr.mxu0 0.0
        %714 = vmatpush2.msra.mxu0 0.0
        %715 = vmatprep.subr.mxu0 0.0
        %716 = vmatpush2.msra.mxu0 0.0
        %717 = vmatprep.subr.mxu0 0.0
        %718 = vmatpush2.msra.mxu0 0.0
        %719 = vmatprep.subr.mxu0 0.0
        %720 = vmatpush2.msra.mxu0 0.0
        %721 = vmatprep.subr.mxu0 0.0
        %722 = vmatpush2.msra.mxu0 0.0
        %723 = vmatprep.subr.mxu0 0.0
        %724 = vmatpush2.msra.mxu0 0.0
        %725 = vmatprep.subr.mxu0 0.0
        %726 = vmatpush2.msra.mxu0 0.0
        %727 = vmatprep.subr.mxu0 0.0
        %728 = vmatpush2.msra.mxu0 0.0
        %729 = vmatprep.subr.mxu0 0.0
        %730 = vmatpush2.msra.mxu0 0.0
        %731 = vmatprep.mubr.f32.mxu0 0.0
        %732 = vmatmul.mubr.f32.gmra.mxu0 %v346
        %v733 = vpop.f32.mrf.mxu0
        %v734 = vadd.f32 0.0, %v733
        %v735 = vpop.f32.mrf.mxu0
        %736 = vmatprep.mubr.f32.mxu0 0.0
        %737 = vmatmul.mubr.f32.gmra.mxu0 %v349
        %v738 = vpop.f32.mrf.mxu0
        %v739 = vadd.f32 0.0, %v738
        %v740 = vpop.f32.mrf.mxu0
        %741 = vmatprep.mubr.f32.mxu0 0.0
        %742 = vmatmul.mubr.f32.gmra.mxu0 %v352
        %v743 = vpop.f32.mrf.mxu0
        %v744 = vadd.f32 0.0, %v743
        %v745 = vpop.f32.mrf.mxu0
        %746 = vmatprep.mubr.f32.mxu0 0.0
        %747 = vmatmul.mubr.f32.gmra.mxu0 %v355
        %v748 = vpop.f32.mrf.mxu0
        %v749 = vadd.f32 0.0, %v748
        %v750 = vpop.f32.mrf.mxu0
        %751 = vdwg.mxu0
        %s752 = scalar_lea.vmem %s2, 32
        %v753 = vld [vmem:[%s752] sm:$0xff]
        %v754 = vld [vmem:[%s752 + $0x8] sm:$0xff]
        %v755 = vld [vmem:[%s752 + $0x10] sm:$0xff]
        %v756 = vld [vmem:[%s752 + $0x18] sm:$0xff]
        %s757 = scalar_lea.vmem %s3, 32
        %v758 = vld [vmem:[%s757] sm:$0xff]
        %v759 = vld [vmem:[%s757 + $0x8] sm:$0xff]
        %v760 = vld [vmem:[%s757 + $0x10] sm:$0xff]
        %v761 = vld [vmem:[%s757 + $0x18] sm:$0xff]
        %v763 = vsel %vm320, %v659, 0
        %v766 = vsel %vm320, %v660, 0
        %v769 = vsel %vm320, %v661, 0
        %v772 = vsel %vm320, %v662, 0
        %774 = vmatprep.subr.mxu0 0.0
        %775 = vmatpush1.msra.mxu0 0.0
        %776 = vmatprep.subr.mxu0 0.0
        %777 = vmatpush1.msra.mxu0 0.0
        %778 = vmatprep.subr.mxu0 0.0
        %779 = vmatpush1.msra.mxu0 0.0
        %780 = vmatprep.subr.mxu0 0.0
        %781 = vmatpush1.msra.mxu0 0.0
        %782 = vmatprep.subr.mxu0 0.0
        %783 = vmatpush1.msra.mxu0 0.0
        %784 = vmatprep.subr.mxu0 0.0
        %785 = vmatpush1.msra.mxu0 0.0
        %786 = vmatprep.subr.mxu0 0.0
        %787 = vmatpush1.msra.mxu0 0.0
        %788 = vmatprep.subr.mxu0 0.0
        %789 = vmatpush1.msra.mxu0 0.0
        %790 = vmatprep.subr.mxu0 0.0
        %791 = vmatpush1.msra.mxu0 0.0
        %792 = vmatprep.subr.mxu0 0.0
        %793 = vmatpush1.msra.mxu0 0.0
        %794 = vmatprep.subr.mxu0 0.0
        %795 = vmatpush1.msra.mxu0 0.0
        %796 = vmatprep.subr.mxu0 0.0
        %797 = vmatpush1.msra.mxu0 0.0
        %798 = vmatprep.subr.mxu0 0.0
        %799 = vmatpush1.msra.mxu0 %v761
        %800 = vmatprep.subr.mxu0 0.0
        %801 = vmatpush1.msra.mxu0 %v760
        %802 = vmatprep.subr.mxu0 0.0
        %803 = vmatpush1.msra.mxu0 %v759
        %804 = vmatprep.subr.mxu0 0.0
        %805 = vmatpush1.msra.mxu0 %v758
        %806 = vmatprep.subr.mxu0 0.0
        %807 = vmatpush2.msra.mxu0 0.0
        %808 = vmatprep.subr.mxu0 0.0
        %809 = vmatpush2.msra.mxu0 0.0
        %810 = vmatprep.subr.mxu0 0.0
        %811 = vmatpush2.msra.mxu0 0.0
        %812 = vmatprep.subr.mxu0 0.0
        %813 = vmatpush2.msra.mxu0 0.0
        %814 = vmatprep.subr.mxu0 0.0
        %815 = vmatpush2.msra.mxu0 0.0
        %816 = vmatprep.subr.mxu0 0.0
        %817 = vmatpush2.msra.mxu0 0.0
        %818 = vmatprep.subr.mxu0 0.0
        %819 = vmatpush2.msra.mxu0 0.0
        %820 = vmatprep.subr.mxu0 0.0
        %821 = vmatpush2.msra.mxu0 0.0
        %822 = vmatprep.subr.mxu0 0.0
        %823 = vmatpush2.msra.mxu0 0.0
        %824 = vmatprep.subr.mxu0 0.0
        %825 = vmatpush2.msra.mxu0 0.0
        %826 = vmatprep.subr.mxu0 0.0
        %827 = vmatpush2.msra.mxu0 0.0
        %828 = vmatprep.subr.mxu0 0.0
        %829 = vmatpush2.msra.mxu0 0.0
        %830 = vmatprep.subr.mxu0 0.0
        %831 = vmatpush2.msra.mxu0 0.0
        %832 = vmatprep.subr.mxu0 0.0
        %833 = vmatpush2.msra.mxu0 0.0
        %834 = vmatprep.subr.mxu0 0.0
        %835 = vmatpush2.msra.mxu0 0.0
        %836 = vmatprep.subr.mxu0 0.0
        %837 = vmatpush2.msra.mxu0 0.0
        %838 = vmatprep.mubr.f32.mxu0 0.0
        %839 = vmatmul.mubr.f32.gmra.mxu0 %v763
        %v840 = vpop.f32.mrf.mxu0
        %v841 = vadd.f32 0.0, %v840
        %v842 = vpop.f32.mrf.mxu0
        %843 = vmatprep.mubr.f32.mxu0 0.0
        %844 = vmatmul.mubr.f32.gmra.mxu0 %v766
        %v845 = vpop.f32.mrf.mxu0
        %v846 = vadd.f32 0.0, %v845
        %v847 = vpop.f32.mrf.mxu0
        %848 = vmatprep.mubr.f32.mxu0 0.0
        %849 = vmatmul.mubr.f32.gmra.mxu0 %v769
        %v850 = vpop.f32.mrf.mxu0
        %v851 = vadd.f32 0.0, %v850
        %v852 = vpop.f32.mrf.mxu0
        %853 = vmatprep.mubr.f32.mxu0 0.0
        %854 = vmatmul.mubr.f32.gmra.mxu0 %v772
        %v855 = vpop.f32.mrf.mxu0
        %v856 = vadd.f32 0.0, %v855
        %v857 = vpop.f32.mrf.mxu0
        %858 = vdwg.mxu0
        %v860 = vsel %vm320, %v734, 0
        %v863 = vsel %vm320, %v739, 0
        %v866 = vsel %vm320, %v744, 0
        %v869 = vsel %vm320, %v749, 0
        %871 = vmatprep.subr.mxu0 0.0
        %872 = vmatpush1.msra.mxu0 0.0
        %873 = vmatprep.subr.mxu0 0.0
        %874 = vmatpush1.msra.mxu0 0.0
        %875 = vmatprep.subr.mxu0 0.0
        %876 = vmatpush1.msra.mxu0 0.0
        %877 = vmatprep.subr.mxu0 0.0
        %878 = vmatpush1.msra.mxu0 0.0
        %879 = vmatprep.subr.mxu0 0.0
        %880 = vmatpush1.msra.mxu0 0.0
        %881 = vmatprep.subr.mxu0 0.0
        %882 = vmatpush1.msra.mxu0 0.0
        %883 = vmatprep.subr.mxu0 0.0
        %884 = vmatpush1.msra.mxu0 0.0
        %885 = vmatprep.subr.mxu0 0.0
        %886 = vmatpush1.msra.mxu0 0.0
        %887 = vmatprep.subr.mxu0 0.0
        %888 = vmatpush1.msra.mxu0 0.0
        %889 = vmatprep.subr.mxu0 0.0
        %890 = vmatpush1.msra.mxu0 0.0
        %891 = vmatprep.subr.mxu0 0.0
        %892 = vmatpush1.msra.mxu0 0.0
        %893 = vmatprep.subr.mxu0 0.0
        %894 = vmatpush1.msra.mxu0 0.0
        %895 = vmatprep.subr.mxu0 0.0
        %896 = vmatpush1.msra.mxu0 %v756
        %897 = vmatprep.subr.mxu0 0.0
        %898 = vmatpush1.msra.mxu0 %v755
        %899 = vmatprep.subr.mxu0 0.0
        %900 = vmatpush1.msra.mxu0 %v754
        %901 = vmatprep.subr.mxu0 0.0
        %902 = vmatpush1.msra.mxu0 %v753
        %903 = vmatprep.subr.mxu0 0.0
        %904 = vmatpush2.msra.mxu0 0.0
        %905 = vmatprep.subr.mxu0 0.0
        %906 = vmatpush2.msra.mxu0 0.0
        %907 = vmatprep.subr.mxu0 0.0
        %908 = vmatpush2.msra.mxu0 0.0
        %909 = vmatprep.subr.mxu0 0.0
        %910 = vmatpush2.msra.mxu0 0.0
        %911 = vmatprep.subr.mxu0 0.0
        %912 = vmatpush2.msra.mxu0 0.0
        %913 = vmatprep.subr.mxu0 0.0
        %914 = vmatpush2.msra.mxu0 0.0
        %915 = vmatprep.subr.mxu0 0.0
        %916 = vmatpush2.msra.mxu0 0.0
        %917 = vmatprep.subr.mxu0 0.0
        %918 = vmatpush2.msra.mxu0 0.0
        %919 = vmatprep.subr.mxu0 0.0
        %920 = vmatpush2.msra.mxu0 0.0
        %921 = vmatprep.subr.mxu0 0.0
        %922 = vmatpush2.msra.mxu0 0.0
        %923 = vmatprep.subr.mxu0 0.0
        %924 = vmatpush2.msra.mxu0 0.0
        %925 = vmatprep.subr.mxu0 0.0
        %926 = vmatpush2.msra.mxu0 0.0
        %927 = vmatprep.subr.mxu0 0.0
        %928 = vmatpush2.msra.mxu0 0.0
        %929 = vmatprep.subr.mxu0 0.0
        %930 = vmatpush2.msra.mxu0 0.0
        %931 = vmatprep.subr.mxu0 0.0
        %932 = vmatpush2.msra.mxu0 0.0
        %933 = vmatprep.subr.mxu0 0.0
        %934 = vmatpush2.msra.mxu0 0.0
        %935 = vmatprep.mubr.f32.mxu0 0.0
        %936 = vmatmul.mubr.f32.gmra.mxu0 %v860
        %v937 = vpop.f32.mrf.mxu0
        %v938 = vadd.f32 %v841, %v937
        %v939 = vpop.f32.mrf.mxu0
        %940 = vmatprep.mubr.f32.mxu0 0.0
        %941 = vmatmul.mubr.f32.gmra.mxu0 %v863
        %v942 = vpop.f32.mrf.mxu0
        %v943 = vadd.f32 %v846, %v942
        %v944 = vpop.f32.mrf.mxu0
        %945 = vmatprep.mubr.f32.mxu0 0.0
        %946 = vmatmul.mubr.f32.gmra.mxu0 %v866
        %v947 = vpop.f32.mrf.mxu0
        %v948 = vadd.f32 %v851, %v947
        %v949 = vpop.f32.mrf.mxu0
        %950 = vmatprep.mubr.f32.mxu0 0.0
        %951 = vmatmul.mubr.f32.gmra.mxu0 %v869
        %v952 = vpop.f32.mrf.mxu0
        %v953 = vadd.f32 %v856, %v952
        %v954 = vpop.f32.mrf.mxu0
        %955 = vdwg.mxu0
        %s956 = scalar_lea.vmem %s4, 1
        %v957 = vld [vmem:[%s956] sm:$0x1]
        %v959 = vlaneseq
        %v960 = vshrl.u32 %v959, 7
        %v961 = vsub.s32 0, %v960
        %v962 = vrot.slane %v957, %v961
        %v964 = vadd.f32 %v938, %v962
        %v965 = vadd.f32 %v943, %v962
        %v966 = vadd.f32 %v948, %v962
        %v967 = vadd.f32 %v953, %v962
        %v968 = vmax.f32 %v964, 0.0
        %v969 = vmax.f32 %v965, 0.0
        %v970 = vmax.f32 %v966, 0.0
        %v971 = vmax.f32 %v967, 0.0
        %v972 = vadd.f32 %v968, %v659
        %v973 = vadd.f32 %v969, %v660
        %v974 = vadd.f32 %v970, %v661
        %v975 = vadd.f32 %v971, %v662
        %v976 = vmul.f32 %v333, %v972
        %v977 = vmul.f32 %v334, %v973
        %v978 = vmul.f32 %v335, %v974
        %v979 = vmul.f32 %v336, %v975
        %980 = vmatprep.subr.mxu0 0.0
        %981 = vmatpush1.msra.mxu0 0.0
        %982 = vmatprep.subr.mxu0 0.0
        %983 = vmatpush1.msra.mxu0 0.0
        %984 = vmatprep.subr.mxu0 0.0
        %985 = vmatpush1.msra.mxu0 0.0
        %986 = vmatprep.subr.mxu0 0.0
        %987 = vmatpush1.msra.mxu0 0.0
        %988 = vmatprep.subr.mxu0 0.0
        %989 = vmatpush1.msra.mxu0 0.0
        %990 = vmatprep.subr.mxu0 0.0
        %991 = vmatpush1.msra.mxu0 0.0
        %992 = vmatprep.subr.mxu0 0.0
        %993 = vmatpush1.msra.mxu0 0.0
        %994 = vmatprep.subr.mxu0 0.0
        %995 = vmatpush1.msra.mxu0 0.0
        %996 = vmatprep.subr.mxu0 0.0
        %997 = vmatpush1.msra.mxu0 0.0
        %998 = vmatprep.subr.mxu0 0.0
        %999 = vmatpush1.msra.mxu0 0.0
        %1000 = vmatprep.subr.mxu0 0.0
        %1001 = vmatpush1.msra.mxu0 0.0
        %1002 = vmatprep.subr.mxu0 0.0
        %1003 = vmatpush1.msra.mxu0 0.0
        %1004 = vmatprep.subr.mxu0 0.0
        %1005 = vmatpush1.msra.mxu0 %v979
        %1006 = vmatprep.subr.mxu0 0.0
        %1007 = vmatpush1.msra.mxu0 %v978
        %1008 = vmatprep.subr.mxu0 0.0
        %1009 = vmatpush1.msra.mxu0 %v977
        %1010 = vmatprep.subr.mxu0 0.0
        %1011 = vmatpush1.msra.mxu0 %v976
        %1012 = vmatprep.subr.mxu0 0.0
        %1013 = vmatpush2.msra.mxu0 0.0
        %1014 = vmatprep.subr.mxu0 0.0
        %1015 = vmatpush2.msra.mxu0 0.0
        %1016 = vmatprep.subr.mxu0 0.0
        %1017 = vmatpush2.msra.mxu0 0.0
        %1018 = vmatprep.subr.mxu0 0.0
        %1019 = vmatpush2.msra.mxu0 0.0
        %1020 = vmatprep.subr.mxu0 0.0
        %1021 = vmatpush2.msra.mxu0 0.0
        %1022 = vmatprep.subr.mxu0 0.0
        %1023 = vmatpush2.msra.mxu0 0.0
        %1024 = vmatprep.subr.mxu0 0.0
        %1025 = vmatpush2.msra.mxu0 0.0
        %1026 = vmatprep.subr.mxu0 0.0
        %1027 = vmatpush2.msra.mxu0 0.0
        %1028 = vmatprep.subr.mxu0 0.0
        %1029 = vmatpush2.msra.mxu0 0.0
        %1030 = vmatprep.subr.mxu0 0.0
        %1031 = vmatpush2.msra.mxu0 0.0
        %1032 = vmatprep.subr.mxu0 0.0
        %1033 = vmatpush2.msra.mxu0 0.0
        %1034 = vmatprep.subr.mxu0 0.0
        %1035 = vmatpush2.msra.mxu0 0.0
        %1036 = vmatprep.subr.mxu0 0.0
        %1037 = vmatpush2.msra.mxu0 0.0
        %1038 = vmatprep.subr.mxu0 0.0
        %1039 = vmatpush2.msra.mxu0 0.0
        %1040 = vmatprep.subr.mxu0 0.0
        %1041 = vmatpush2.msra.mxu0 0.0
        %1042 = vmatprep.subr.mxu0 0.0
        %1043 = vmatpush2.msra.mxu0 0.0
        %1044 = vmatprep.mubr.f32.mxu0 0.0
        %1045 = vmatmul.mubr.f32.gmra.mxu0 %v346
        %v1046 = vpop.f32.mrf.mxu0
        %v1047 = vadd.f32 0.0, %v1046
        %v1048 = vpop.f32.mrf.mxu0
        %1049 = vmatprep.mubr.f32.mxu0 0.0
        %1050 = vmatmul.mubr.f32.gmra.mxu0 %v349
        %v1051 = vpop.f32.mrf.mxu0
        %v1052 = vadd.f32 0.0, %v1051
        %v1053 = vpop.f32.mrf.mxu0
        %1054 = vmatprep.mubr.f32.mxu0 0.0
        %1055 = vmatmul.mubr.f32.gmra.mxu0 %v352
        %v1056 = vpop.f32.mrf.mxu0
        %v1057 = vadd.f32 0.0, %v1056
        %v1058 = vpop.f32.mrf.mxu0
        %1059 = vmatprep.mubr.f32.mxu0 0.0
        %1060 = vmatmul.mubr.f32.gmra.mxu0 %v355
        %v1061 = vpop.f32.mrf.mxu0
        %v1062 = vadd.f32 0.0, %v1061
        %v1063 = vpop.f32.mrf.mxu0
        %1064 = vdwg.mxu0
        %s1065 = scalar_lea.vmem %s2, 64
        %v1066 = vld [vmem:[%s1065] sm:$0xff]
        %v1067 = vld [vmem:[%s1065 + $0x8] sm:$0xff]
        %v1068 = vld [vmem:[%s1065 + $0x10] sm:$0xff]
        %v1069 = vld [vmem:[%s1065 + $0x18] sm:$0xff]
        %s1070 = scalar_lea.vmem %s3, 64
        %v1071 = vld [vmem:[%s1070] sm:$0xff]
        %v1072 = vld [vmem:[%s1070 + $0x8] sm:$0xff]
        %v1073 = vld [vmem:[%s1070 + $0x10] sm:$0xff]
        %v1074 = vld [vmem:[%s1070 + $0x18] sm:$0xff]
        %v1076 = vsel %vm320, %v972, 0
        %v1079 = vsel %vm320, %v973, 0
        %v1082 = vsel %vm320, %v974, 0
        %v1085 = vsel %vm320, %v975, 0
        %1087 = vmatprep.subr.mxu0 0.0
        %1088 = vmatpush1.msra.mxu0 0.0
        %1089 = vmatprep.subr.mxu0 0.0
        %1090 = vmatpush1.msra.mxu0 0.0
        %1091 = vmatprep.subr.mxu0 0.0
        %1092 = vmatpush1.msra.mxu0 0.0
        %1093 = vmatprep.subr.mxu0 0.0
        %1094 = vmatpush1.msra.mxu0 0.0
        %1095 = vmatprep.subr.mxu0 0.0
        %1096 = vmatpush1.msra.mxu0 0.0
        %1097 = vmatprep.subr.mxu0 0.0
        %1098 = vmatpush1.msra.mxu0 0.0
        %1099 = vmatprep.subr.mxu0 0.0
        %1100 = vmatpush1.msra.mxu0 0.0
        %1101 = vmatprep.subr.mxu0 0.0
        %1102 = vmatpush1.msra.mxu0 0.0
        %1103 = vmatprep.subr.mxu0 0.0
        %1104 = vmatpush1.msra.mxu0 0.0
        %1105 = vmatprep.subr.mxu0 0.0
        %1106 = vmatpush1.msra.mxu0 0.0
        %1107 = vmatprep.subr.mxu0 0.0
        %1108 = vmatpush1.msra.mxu0 0.0
        %1109 = vmatprep.subr.mxu0 0.0
        %1110 = vmatpush1.msra.mxu0 0.0
        %1111 = vmatprep.subr.mxu0 0.0
        %1112 = vmatpush1.msra.mxu0 %v1074
        %1113 = vmatprep.subr.mxu0 0.0
        %1114 = vmatpush1.msra.mxu0 %v1073
        %1115 = vmatprep.subr.mxu0 0.0
        %1116 = vmatpush1.msra.mxu0 %v1072
        %1117 = vmatprep.subr.mxu0 0.0
        %1118 = vmatpush1.msra.mxu0 %v1071
        %1119 = vmatprep.subr.mxu0 0.0
        %1120 = vmatpush2.msra.mxu0 0.0
        %1121 = vmatprep.subr.mxu0 0.0
        %1122 = vmatpush2.msra.mxu0 0.0
        %1123 = vmatprep.subr.mxu0 0.0
        %1124 = vmatpush2.msra.mxu0 0.0
        %1125 = vmatprep.subr.mxu0 0.0
        %1126 = vmatpush2.msra.mxu0 0.0
        %1127 = vmatprep.subr.mxu0 0.0
        %1128 = vmatpush2.msra.mxu0 0.0
        %1129 = vmatprep.subr.mxu0 0.0
        %1130 = vmatpush2.msra.mxu0 0.0
        %1131 = vmatprep.subr.mxu0 0.0
        %1132 = vmatpush2.msra.mxu0 0.0
        %1133 = vmatprep.subr.mxu0 0.0
        %1134 = vmatpush2.msra.mxu0 0.0
        %1135 = vmatprep.subr.mxu0 0.0
        %1136 = vmatpush2.msra.mxu0 0.0
        %1137 = vmatprep.subr.mxu0 0.0
        %1138 = vmatpush2.msra.mxu0 0.0
        %1139 = vmatprep.subr.mxu0 0.0
        %1140 = vmatpush2.msra.mxu0 0.0
        %1141 = vmatprep.subr.mxu0 0.0
        %1142 = vmatpush2.msra.mxu0 0.0
        %1143 = vmatprep.subr.mxu0 0.0
        %1144 = vmatpush2.msra.mxu0 0.0
        %1145 = vmatprep.subr.mxu0 0.0
        %1146 = vmatpush2.msra.mxu0 0.0
        %1147 = vmatprep.subr.mxu0 0.0
        %1148 = vmatpush2.msra.mxu0 0.0
        %1149 = vmatprep.subr.mxu0 0.0
        %1150 = vmatpush2.msra.mxu0 0.0
        %1151 = vmatprep.mubr.f32.mxu0 0.0
        %1152 = vmatmul.mubr.f32.gmra.mxu0 %v1076
        %v1153 = vpop.f32.mrf.mxu0
        %v1154 = vadd.f32 0.0, %v1153
        %v1155 = vpop.f32.mrf.mxu0
        %1156 = vmatprep.mubr.f32.mxu0 0.0
        %1157 = vmatmul.mubr.f32.gmra.mxu0 %v1079
        %v1158 = vpop.f32.mrf.mxu0
        %v1159 = vadd.f32 0.0, %v1158
        %v1160 = vpop.f32.mrf.mxu0
        %1161 = vmatprep.mubr.f32.mxu0 0.0
        %1162 = vmatmul.mubr.f32.gmra.mxu0 %v1082
        %v1163 = vpop.f32.mrf.mxu0
        %v1164 = vadd.f32 0.0, %v1163
        %v1165 = vpop.f32.mrf.mxu0
        %1166 = vmatprep.mubr.f32.mxu0 0.0
        %1167 = vmatmul.mubr.f32.gmra.mxu0 %v1085
        %v1168 = vpop.f32.mrf.mxu0
        %v1169 = vadd.f32 0.0, %v1168
        %v1170 = vpop.f32.mrf.mxu0
        %1171 = vdwg.mxu0
        %v1173 = vsel %vm320, %v1047, 0
        %v1176 = vsel %vm320, %v1052, 0
        %v1179 = vsel %vm320, %v1057, 0
        %v1182 = vsel %vm320, %v1062, 0
        %1184 = vmatprep.subr.mxu0 0.0
        %1185 = vmatpush1.msra.mxu0 0.0
        %1186 = vmatprep.subr.mxu0 0.0
        %1187 = vmatpush1.msra.mxu0 0.0
        %1188 = vmatprep.subr.mxu0 0.0
        %1189 = vmatpush1.msra.mxu0 0.0
        %1190 = vmatprep.subr.mxu0 0.0
        %1191 = vmatpush1.msra.mxu0 0.0
        %1192 = vmatprep.subr.mxu0 0.0
        %1193 = vmatpush1.msra.mxu0 0.0
        %1194 = vmatprep.subr.mxu0 0.0
        %1195 = vmatpush1.msra.mxu0 0.0
        %1196 = vmatprep.subr.mxu0 0.0
        %1197 = vmatpush1.msra.mxu0 0.0
        %1198 = vmatprep.subr.mxu0 0.0
        %1199 = vmatpush1.msra.mxu0 0.0
        %1200 = vmatprep.subr.mxu0 0.0
        %1201 = vmatpush1.msra.mxu0 0.0
        %1202 = vmatprep.subr.mxu0 0.0
        %1203 = vmatpush1.msra.mxu0 0.0
        %1204 = vmatprep.subr.mxu0 0.0
        %1205 = vmatpush1.msra.mxu0 0.0
        %1206 = vmatprep.subr.mxu0 0.0
        %1207 = vmatpush1.msra.mxu0 0.0
        %1208 = vmatprep.subr.mxu0 0.0
        %1209 = vmatpush1.msra.mxu0 %v1069
        %1210 = vmatprep.subr.mxu0 0.0
        %1211 = vmatpush1.msra.mxu0 %v1068
        %1212 = vmatprep.subr.mxu0 0.0
        %1213 = vmatpush1.msra.mxu0 %v1067
        %1214 = vmatprep.subr.mxu0 0.0
        %1215 = vmatpush1.msra.mxu0 %v1066
        %1216 = vmatprep.subr.mxu0 0.0
        %1217 = vmatpush2.msra.mxu0 0.0
        %1218 = vmatprep.subr.mxu0 0.0
        %1219 = vmatpush2.msra.mxu0 0.0
        %1220 = vmatprep.subr.mxu0 0.0
        %1221 = vmatpush2.msra.mxu0 0.0
        %1222 = vmatprep.subr.mxu0 0.0
        %1223 = vmatpush2.msra.mxu0 0.0
        %1224 = vmatprep.subr.mxu0 0.0
        %1225 = vmatpush2.msra.mxu0 0.0
        %1226 = vmatprep.subr.mxu0 0.0
        %1227 = vmatpush2.msra.mxu0 0.0
        %1228 = vmatprep.subr.mxu0 0.0
        %1229 = vmatpush2.msra.mxu0 0.0
        %1230 = vmatprep.subr.mxu0 0.0
        %1231 = vmatpush2.msra.mxu0 0.0
        %1232 = vmatprep.subr.mxu0 0.0
        %1233 = vmatpush2.msra.mxu0 0.0
        %1234 = vmatprep.subr.mxu0 0.0
        %1235 = vmatpush2.msra.mxu0 0.0
        %1236 = vmatprep.subr.mxu0 0.0
        %1237 = vmatpush2.msra.mxu0 0.0
        %1238 = vmatprep.subr.mxu0 0.0
        %1239 = vmatpush2.msra.mxu0 0.0
        %1240 = vmatprep.subr.mxu0 0.0
        %1241 = vmatpush2.msra.mxu0 0.0
        %1242 = vmatprep.subr.mxu0 0.0
        %1243 = vmatpush2.msra.mxu0 0.0
        %1244 = vmatprep.subr.mxu0 0.0
        %1245 = vmatpush2.msra.mxu0 0.0
        %1246 = vmatprep.subr.mxu0 0.0
        %1247 = vmatpush2.msra.mxu0 0.0
        %1248 = vmatprep.mubr.f32.mxu0 0.0
        %1249 = vmatmul.mubr.f32.gmra.mxu0 %v1173
        %v1250 = vpop.f32.mrf.mxu0
        %v1251 = vadd.f32 %v1154, %v1250
        %v1252 = vpop.f32.mrf.mxu0
        %1253 = vmatprep.mubr.f32.mxu0 0.0
        %1254 = vmatmul.mubr.f32.gmra.mxu0 %v1176
        %v1255 = vpop.f32.mrf.mxu0
        %v1256 = vadd.f32 %v1159, %v1255
        %v1257 = vpop.f32.mrf.mxu0
        %1258 = vmatprep.mubr.f32.mxu0 0.0
        %1259 = vmatmul.mubr.f32.gmra.mxu0 %v1179
        %v1260 = vpop.f32.mrf.mxu0
        %v1261 = vadd.f32 %v1164, %v1260
        %v1262 = vpop.f32.mrf.mxu0
        %1263 = vmatprep.mubr.f32.mxu0 0.0
        %1264 = vmatmul.mubr.f32.gmra.mxu0 %v1182
        %v1265 = vpop.f32.mrf.mxu0
        %v1266 = vadd.f32 %v1169, %v1265
        %v1267 = vpop.f32.mrf.mxu0
        %1268 = vdwg.mxu0
        %s1269 = scalar_lea.vmem %s4, 2
        %v1270 = vld [vmem:[%s1269] sm:$0x1]
        %v1272 = vlaneseq
        %v1273 = vshrl.u32 %v1272, 7
        %v1274 = vsub.s32 0, %v1273
        %v1275 = vrot.slane %v1270, %v1274
        %v1277 = vadd.f32 %v1251, %v1275
        %v1278 = vadd.f32 %v1256, %v1275
        %v1279 = vadd.f32 %v1261, %v1275
        %v1280 = vadd.f32 %v1266, %v1275
        %v1281 = vmax.f32 %v1277, 0.0
        %v1282 = vmax.f32 %v1278, 0.0
        %v1283 = vmax.f32 %v1279, 0.0
        %v1284 = vmax.f32 %v1280, 0.0
        %v1285 = vadd.f32 %v1281, %v972
        %v1286 = vadd.f32 %v1282, %v973
        %v1287 = vadd.f32 %v1283, %v974
        %v1288 = vadd.f32 %v1284, %v975
        %v1289 = vmul.f32 %v333, %v1285
        %v1290 = vmul.f32 %v334, %v1286
        %v1291 = vmul.f32 %v335, %v1287
        %v1292 = vmul.f32 %v336, %v1288
        %1293 = vmatprep.subr.mxu0 0.0
        %1294 = vmatpush1.msra.mxu0 0.0
        %1295 = vmatprep.subr.mxu0 0.0
        %1296 = vmatpush1.msra.mxu0 0.0
        %1297 = vmatprep.subr.mxu0 0.0
        %1298 = vmatpush1.msra.mxu0 0.0
        %1299 = vmatprep.subr.mxu0 0.0
        %1300 = vmatpush1.msra.mxu0 0.0
        %1301 = vmatprep.subr.mxu0 0.0
        %1302 = vmatpush1.msra.mxu0 0.0
        %1303 = vmatprep.subr.mxu0 0.0
        %1304 = vmatpush1.msra.mxu0 0.0
        %1305 = vmatprep.subr.mxu0 0.0
        %1306 = vmatpush1.msra.mxu0 0.0
        %1307 = vmatprep.subr.mxu0 0.0
        %1308 = vmatpush1.msra.mxu0 0.0
        %1309 = vmatprep.subr.mxu0 0.0
        %1310 = vmatpush1.msra.mxu0 0.0
        %1311 = vmatprep.subr.mxu0 0.0
        %1312 = vmatpush1.msra.mxu0 0.0
        %1313 = vmatprep.subr.mxu0 0.0
        %1314 = vmatpush1.msra.mxu0 0.0
        %1315 = vmatprep.subr.mxu0 0.0
        %1316 = vmatpush1.msra.mxu0 0.0
        %1317 = vmatprep.subr.mxu0 0.0
        %1318 = vmatpush1.msra.mxu0 %v1292
        %1319 = vmatprep.subr.mxu0 0.0
        %1320 = vmatpush1.msra.mxu0 %v1291
        %1321 = vmatprep.subr.mxu0 0.0
        %1322 = vmatpush1.msra.mxu0 %v1290
        %1323 = vmatprep.subr.mxu0 0.0
        %1324 = vmatpush1.msra.mxu0 %v1289
        %1325 = vmatprep.subr.mxu0 0.0
        %1326 = vmatpush2.msra.mxu0 0.0
        %1327 = vmatprep.subr.mxu0 0.0
        %1328 = vmatpush2.msra.mxu0 0.0
        %1329 = vmatprep.subr.mxu0 0.0
        %1330 = vmatpush2.msra.mxu0 0.0
        %1331 = vmatprep.subr.mxu0 0.0
        %1332 = vmatpush2.msra.mxu0 0.0
        %1333 = vmatprep.subr.mxu0 0.0
        %1334 = vmatpush2.msra.mxu0 0.0
        %1335 = vmatprep.subr.mxu0 0.0
        %1336 = vmatpush2.msra.mxu0 0.0
        %1337 = vmatprep.subr.mxu0 0.0
        %1338 = vmatpush2.msra.mxu0 0.0
        %1339 = vmatprep.subr.mxu0 0.0
        %1340 = vmatpush2.msra.mxu0 0.0
        %1341 = vmatprep.subr.mxu0 0.0
        %1342 = vmatpush2.msra.mxu0 0.0
        %1343 = vmatprep.subr.mxu0 0.0
        %1344 = vmatpush2.msra.mxu0 0.0
        %1345 = vmatprep.subr.mxu0 0.0
        %1346 = vmatpush2.msra.mxu0 0.0
        %1347 = vmatprep.subr.mxu0 0.0
        %1348 = vmatpush2.msra.mxu0 0.0
        %1349 = vmatprep.subr.mxu0 0.0
        %1350 = vmatpush2.msra.mxu0 0.0
        %1351 = vmatprep.subr.mxu0 0.0
        %1352 = vmatpush2.msra.mxu0 0.0
        %1353 = vmatprep.subr.mxu0 0.0
        %1354 = vmatpush2.msra.mxu0 0.0
        %1355 = vmatprep.subr.mxu0 0.0
        %1356 = vmatpush2.msra.mxu0 0.0
        %1357 = vmatprep.mubr.f32.mxu0 0.0
        %1358 = vmatmul.mubr.f32.gmra.mxu0 %v346
        %v1359 = vpop.f32.mrf.mxu0
        %v1360 = vadd.f32 0.0, %v1359
        %v1361 = vpop.f32.mrf.mxu0
        %1362 = vmatprep.mubr.f32.mxu0 0.0
        %1363 = vmatmul.mubr.f32.gmra.mxu0 %v349
        %v1364 = vpop.f32.mrf.mxu0
        %v1365 = vadd.f32 0.0, %v1364
        %v1366 = vpop.f32.mrf.mxu0
        %1367 = vmatprep.mubr.f32.mxu0 0.0
        %1368 = vmatmul.mubr.f32.gmra.mxu0 %v352
        %v1369 = vpop.f32.mrf.mxu0
        %v1370 = vadd.f32 0.0, %v1369
        %v1371 = vpop.f32.mrf.mxu0
        %1372 = vmatprep.mubr.f32.mxu0 0.0
        %1373 = vmatmul.mubr.f32.gmra.mxu0 %v355
        %v1374 = vpop.f32.mrf.mxu0
        %v1375 = vadd.f32 0.0, %v1374
        %v1376 = vpop.f32.mrf.mxu0
        %1377 = vdwg.mxu0
        %s1378 = scalar_lea.vmem %s2, 96
        %v1379 = vld [vmem:[%s1378] sm:$0xff]
        %v1380 = vld [vmem:[%s1378 + $0x8] sm:$0xff]
        %v1381 = vld [vmem:[%s1378 + $0x10] sm:$0xff]
        %v1382 = vld [vmem:[%s1378 + $0x18] sm:$0xff]
        %s1383 = scalar_lea.vmem %s3, 96
        %v1384 = vld [vmem:[%s1383] sm:$0xff]
        %v1385 = vld [vmem:[%s1383 + $0x8] sm:$0xff]
        %v1386 = vld [vmem:[%s1383 + $0x10] sm:$0xff]
        %v1387 = vld [vmem:[%s1383 + $0x18] sm:$0xff]
        %v1389 = vsel %vm320, %v1285, 0
        %v1392 = vsel %vm320, %v1286, 0
        %v1395 = vsel %vm320, %v1287, 0
        %v1398 = vsel %vm320, %v1288, 0
        %1400 = vmatprep.subr.mxu0 0.0
        %1401 = vmatpush1.msra.mxu0 0.0
        %1402 = vmatprep.subr.mxu0 0.0
        %1403 = vmatpush1.msra.mxu0 0.0
        %1404 = vmatprep.subr.mxu0 0.0
        %1405 = vmatpush1.msra.mxu0 0.0
        %1406 = vmatprep.subr.mxu0 0.0
        %1407 = vmatpush1.msra.mxu0 0.0
        %1408 = vmatprep.subr.mxu0 0.0
        %1409 = vmatpush1.msra.mxu0 0.0
        %1410 = vmatprep.subr.mxu0 0.0
        %1411 = vmatpush1.msra.mxu0 0.0
        %1412 = vmatprep.subr.mxu0 0.0
        %1413 = vmatpush1.msra.mxu0 0.0
        %1414 = vmatprep.subr.mxu0 0.0
        %1415 = vmatpush1.msra.mxu0 0.0
        %1416 = vmatprep.subr.mxu0 0.0
        %1417 = vmatpush1.msra.mxu0 0.0
        %1418 = vmatprep.subr.mxu0 0.0
        %1419 = vmatpush1.msra.mxu0 0.0
        %1420 = vmatprep.subr.mxu0 0.0
        %1421 = vmatpush1.msra.mxu0 0.0
        %1422 = vmatprep.subr.mxu0 0.0
        %1423 = vmatpush1.msra.mxu0 0.0
        %1424 = vmatprep.subr.mxu0 0.0
        %1425 = vmatpush1.msra.mxu0 %v1387
        %1426 = vmatprep.subr.mxu0 0.0
        %1427 = vmatpush1.msra.mxu0 %v1386
        %1428 = vmatprep.subr.mxu0 0.0
        %1429 = vmatpush1.msra.mxu0 %v1385
        %1430 = vmatprep.subr.mxu0 0.0
        %1431 = vmatpush1.msra.mxu0 %v1384
        %1432 = vmatprep.subr.mxu0 0.0
        %1433 = vmatpush2.msra.mxu0 0.0
        %1434 = vmatprep.subr.mxu0 0.0
        %1435 = vmatpush2.msra.mxu0 0.0
        %1436 = vmatprep.subr.mxu0 0.0
        %1437 = vmatpush2.msra.mxu0 0.0
        %1438 = vmatprep.subr.mxu0 0.0
        %1439 = vmatpush2.msra.mxu0 0.0
        %1440 = vmatprep.subr.mxu0 0.0
        %1441 = vmatpush2.msra.mxu0 0.0
        %1442 = vmatprep.subr.mxu0 0.0
        %1443 = vmatpush2.msra.mxu0 0.0
        %1444 = vmatprep.subr.mxu0 0.0
        %1445 = vmatpush2.msra.mxu0 0.0
        %1446 = vmatprep.subr.mxu0 0.0
        %1447 = vmatpush2.msra.mxu0 0.0
        %1448 = vmatprep.subr.mxu0 0.0
        %1449 = vmatpush2.msra.mxu0 0.0
        %1450 = vmatprep.subr.mxu0 0.0
        %1451 = vmatpush2.msra.mxu0 0.0
        %1452 = vmatprep.subr.mxu0 0.0
        %1453 = vmatpush2.msra.mxu0 0.0
        %1454 = vmatprep.subr.mxu0 0.0
        %1455 = vmatpush2.msra.mxu0 0.0
        %1456 = vmatprep.subr.mxu0 0.0
        %1457 = vmatpush2.msra.mxu0 0.0
        %1458 = vmatprep.subr.mxu0 0.0
        %1459 = vmatpush2.msra.mxu0 0.0
        %1460 = vmatprep.subr.mxu0 0.0
        %1461 = vmatpush2.msra.mxu0 0.0
        %1462 = vmatprep.subr.mxu0 0.0
        %1463 = vmatpush2.msra.mxu0 0.0
        %1464 = vmatprep.mubr.f32.mxu0 0.0
        %1465 = vmatmul.mubr.f32.gmra.mxu0 %v1389
        %v1466 = vpop.f32.mrf.mxu0
        %v1467 = vadd.f32 0.0, %v1466
        %v1468 = vpop.f32.mrf.mxu0
        %1469 = vmatprep.mubr.f32.mxu0 0.0
        %1470 = vmatmul.mubr.f32.gmra.mxu0 %v1392
        %v1471 = vpop.f32.mrf.mxu0
        %v1472 = vadd.f32 0.0, %v1471
        %v1473 = vpop.f32.mrf.mxu0
        %1474 = vmatprep.mubr.f32.mxu0 0.0
        %1475 = vmatmul.mubr.f32.gmra.mxu0 %v1395
        %v1476 = vpop.f32.mrf.mxu0
        %v1477 = vadd.f32 0.0, %v1476
        %v1478 = vpop.f32.mrf.mxu0
        %1479 = vmatprep.mubr.f32.mxu0 0.0
        %1480 = vmatmul.mubr.f32.gmra.mxu0 %v1398
        %v1481 = vpop.f32.mrf.mxu0
        %v1482 = vadd.f32 0.0, %v1481
        %v1483 = vpop.f32.mrf.mxu0
        %1484 = vdwg.mxu0
        %v1486 = vsel %vm320, %v1360, 0
        %v1489 = vsel %vm320, %v1365, 0
        %v1492 = vsel %vm320, %v1370, 0
        %v1495 = vsel %vm320, %v1375, 0
        %1497 = vmatprep.subr.mxu0 0.0
        %1498 = vmatpush1.msra.mxu0 0.0
        %1499 = vmatprep.subr.mxu0 0.0
        %1500 = vmatpush1.msra.mxu0 0.0
        %1501 = vmatprep.subr.mxu0 0.0
        %1502 = vmatpush1.msra.mxu0 0.0
        %1503 = vmatprep.subr.mxu0 0.0
        %1504 = vmatpush1.msra.mxu0 0.0
        %1505 = vmatprep.subr.mxu0 0.0
        %1506 = vmatpush1.msra.mxu0 0.0
        %1507 = vmatprep.subr.mxu0 0.0
        %1508 = vmatpush1.msra.mxu0 0.0
        %1509 = vmatprep.subr.mxu0 0.0
        %1510 = vmatpush1.msra.mxu0 0.0
        %1511 = vmatprep.subr.mxu0 0.0
        %1512 = vmatpush1.msra.mxu0 0.0
        %1513 = vmatprep.subr.mxu0 0.0
        %1514 = vmatpush1.msra.mxu0 0.0
        %1515 = vmatprep.subr.mxu0 0.0
        %1516 = vmatpush1.msra.mxu0 0.0
        %1517 = vmatprep.subr.mxu0 0.0
        %1518 = vmatpush1.msra.mxu0 0.0
        %1519 = vmatprep.subr.mxu0 0.0
        %1520 = vmatpush1.msra.mxu0 0.0
        %1521 = vmatprep.subr.mxu0 0.0
        %1522 = vmatpush1.msra.mxu0 %v1382
        %1523 = vmatprep.subr.mxu0 0.0
        %1524 = vmatpush1.msra.mxu0 %v1381
        %1525 = vmatprep.subr.mxu0 0.0
        %1526 = vmatpush1.msra.mxu0 %v1380
        %1527 = vmatprep.subr.mxu0 0.0
        %1528 = vmatpush1.msra.mxu0 %v1379
        %1529 = vmatprep.subr.mxu0 0.0
        %1530 = vmatpush2.msra.mxu0 0.0
        %1531 = vmatprep.subr.mxu0 0.0
        %1532 = vmatpush2.msra.mxu0 0.0
        %1533 = vmatprep.subr.mxu0 0.0
        %1534 = vmatpush2.msra.mxu0 0.0
        %1535 = vmatprep.subr.mxu0 0.0
        %1536 = vmatpush2.msra.mxu0 0.0
        %1537 = vmatprep.subr.mxu0 0.0
        %1538 = vmatpush2.msra.mxu0 0.0
        %1539 = vmatprep.subr.mxu0 0.0
        %1540 = vmatpush2.msra.mxu0 0.0
        %1541 = vmatprep.subr.mxu0 0.0
        %1542 = vmatpush2.msra.mxu0 0.0
        %1543 = vmatprep.subr.mxu0 0.0
        %1544 = vmatpush2.msra.mxu0 0.0
        %1545 = vmatprep.subr.mxu0 0.0
        %1546 = vmatpush2.msra.mxu0 0.0
        %1547 = vmatprep.subr.mxu0 0.0
        %1548 = vmatpush2.msra.mxu0 0.0
        %1549 = vmatprep.subr.mxu0 0.0
        %1550 = vmatpush2.msra.mxu0 0.0
        %1551 = vmatprep.subr.mxu0 0.0
        %1552 = vmatpush2.msra.mxu0 0.0
        %1553 = vmatprep.subr.mxu0 0.0
        %1554 = vmatpush2.msra.mxu0 0.0
        %1555 = vmatprep.subr.mxu0 0.0
        %1556 = vmatpush2.msra.mxu0 0.0
        %1557 = vmatprep.subr.mxu0 0.0
        %1558 = vmatpush2.msra.mxu0 0.0
        %1559 = vmatprep.subr.mxu0 0.0
        %1560 = vmatpush2.msra.mxu0 0.0
        %1561 = vmatprep.mubr.f32.mxu0 0.0
        %1562 = vmatmul.mubr.f32.gmra.mxu0 %v1486
        %v1563 = vpop.f32.mrf.mxu0
        %v1564 = vadd.f32 %v1467, %v1563
        %v1565 = vpop.f32.mrf.mxu0
        %1566 = vmatprep.mubr.f32.mxu0 0.0
        %1567 = vmatmul.mubr.f32.gmra.mxu0 %v1489
        %v1568 = vpop.f32.mrf.mxu0
        %v1569 = vadd.f32 %v1472, %v1568
        %v1570 = vpop.f32.mrf.mxu0
        %1571 = vmatprep.mubr.f32.mxu0 0.0
        %1572 = vmatmul.mubr.f32.gmra.mxu0 %v1492
        %v1573 = vpop.f32.mrf.mxu0
        %v1574 = vadd.f32 %v1477, %v1573
        %v1575 = vpop.f32.mrf.mxu0
        %1576 = vmatprep.mubr.f32.mxu0 0.0
        %1577 = vmatmul.mubr.f32.gmra.mxu0 %v1495
        %v1578 = vpop.f32.mrf.mxu0
        %v1579 = vadd.f32 %v1482, %v1578
        %v1580 = vpop.f32.mrf.mxu0
        %1581 = vdwg.mxu0
        %s1582 = scalar_lea.vmem %s4, 3
        %v1583 = vld [vmem:[%s1582] sm:$0x1]
        %v1585 = vlaneseq
        %v1586 = vshrl.u32 %v1585, 7
        %v1587 = vsub.s32 0, %v1586
        %v1588 = vrot.slane %v1583, %v1587
        %v1590 = vadd.f32 %v1564, %v1588
        %v1591 = vadd.f32 %v1569, %v1588
        %v1592 = vadd.f32 %v1574, %v1588
        %v1593 = vadd.f32 %v1579, %v1588
        %v1594 = vmax.f32 %v1590, 0.0
        %v1595 = vmax.f32 %v1591, 0.0
        %v1596 = vmax.f32 %v1592, 0.0
        %v1597 = vmax.f32 %v1593, 0.0
        %v1598 = vadd.f32 %v1594, %v1285
        %v1599 = vadd.f32 %v1595, %v1286
        %v1600 = vadd.f32 %v1596, %v1287
        %v1601 = vadd.f32 %v1597, %v1288
        %v1602 = vmul.f32 %v333, %v1598
        %v1603 = vmul.f32 %v334, %v1599
        %v1604 = vmul.f32 %v335, %v1600
        %v1605 = vmul.f32 %v336, %v1601
        %1606 = vmatprep.subr.mxu0 0.0
        %1607 = vmatpush1.msra.mxu0 0.0
        %1608 = vmatprep.subr.mxu0 0.0
        %1609 = vmatpush1.msra.mxu0 0.0
        %1610 = vmatprep.subr.mxu0 0.0
        %1611 = vmatpush1.msra.mxu0 0.0
        %1612 = vmatprep.subr.mxu0 0.0
        %1613 = vmatpush1.msra.mxu0 0.0
        %1614 = vmatprep.subr.mxu0 0.0
        %1615 = vmatpush1.msra.mxu0 0.0
        %1616 = vmatprep.subr.mxu0 0.0
        %1617 = vmatpush1.msra.mxu0 0.0
        %1618 = vmatprep.subr.mxu0 0.0
        %1619 = vmatpush1.msra.mxu0 0.0
        %1620 = vmatprep.subr.mxu0 0.0
        %1621 = vmatpush1.msra.mxu0 0.0
        %1622 = vmatprep.subr.mxu0 0.0
        %1623 = vmatpush1.msra.mxu0 0.0
        %1624 = vmatprep.subr.mxu0 0.0
        %1625 = vmatpush1.msra.mxu0 0.0
        %1626 = vmatprep.subr.mxu0 0.0
        %1627 = vmatpush1.msra.mxu0 0.0
        %1628 = vmatprep.subr.mxu0 0.0
        %1629 = vmatpush1.msra.mxu0 0.0
        %1630 = vmatprep.subr.mxu0 0.0
        %1631 = vmatpush1.msra.mxu0 %v1605
        %1632 = vmatprep.subr.mxu0 0.0
        %1633 = vmatpush1.msra.mxu0 %v1604
        %1634 = vmatprep.subr.mxu0 0.0
        %1635 = vmatpush1.msra.mxu0 %v1603
        %1636 = vmatprep.subr.mxu0 0.0
        %1637 = vmatpush1.msra.mxu0 %v1602
        %1638 = vmatprep.subr.mxu0 0.0
        %1639 = vmatpush2.msra.mxu0 0.0
        %1640 = vmatprep.subr.mxu0 0.0
        %1641 = vmatpush2.msra.mxu0 0.0
        %1642 = vmatprep.subr.mxu0 0.0
        %1643 = vmatpush2.msra.mxu0 0.0
        %1644 = vmatprep.subr.mxu0 0.0
        %1645 = vmatpush2.msra.mxu0 0.0
        %1646 = vmatprep.subr.mxu0 0.0
        %1647 = vmatpush2.msra.mxu0 0.0
        %1648 = vmatprep.subr.mxu0 0.0
        %1649 = vmatpush2.msra.mxu0 0.0
        %1650 = vmatprep.subr.mxu0 0.0
        %1651 = vmatpush2.msra.mxu0 0.0
        %1652 = vmatprep.subr.mxu0 0.0
        %1653 = vmatpush2.msra.mxu0 0.0
        %1654 = vmatprep.subr.mxu0 0.0
        %1655 = vmatpush2.msra.mxu0 0.0
        %1656 = vmatprep.subr.mxu0 0.0
        %1657 = vmatpush2.msra.mxu0 0.0
        %1658 = vmatprep.subr.mxu0 0.0
        %1659 = vmatpush2.msra.mxu0 0.0
        %1660 = vmatprep.subr.mxu0 0.0
        %1661 = vmatpush2.msra.mxu0 0.0
        %1662 = vmatprep.subr.mxu0 0.0
        %1663 = vmatpush2.msra.mxu0 0.0
        %1664 = vmatprep.subr.mxu0 0.0
        %1665 = vmatpush2.msra.mxu0 0.0
        %1666 = vmatprep.subr.mxu0 0.0
        %1667 = vmatpush2.msra.mxu0 0.0
        %1668 = vmatprep.subr.mxu0 0.0
        %1669 = vmatpush2.msra.mxu0 0.0
        %1670 = vmatprep.mubr.f32.mxu0 0.0
        %1671 = vmatmul.mubr.f32.gmra.mxu0 %v346
        %v1672 = vpop.f32.mrf.mxu0
        %v1673 = vadd.f32 0.0, %v1672
        %v1674 = vpop.f32.mrf.mxu0
        %1675 = vmatprep.mubr.f32.mxu0 0.0
        %1676 = vmatmul.mubr.f32.gmra.mxu0 %v349
        %v1677 = vpop.f32.mrf.mxu0
        %v1678 = vadd.f32 0.0, %v1677
        %v1679 = vpop.f32.mrf.mxu0
        %1680 = vmatprep.mubr.f32.mxu0 0.0
        %1681 = vmatmul.mubr.f32.gmra.mxu0 %v352
        %v1682 = vpop.f32.mrf.mxu0
        %v1683 = vadd.f32 0.0, %v1682
        %v1684 = vpop.f32.mrf.mxu0
        %1685 = vmatprep.mubr.f32.mxu0 0.0
        %1686 = vmatmul.mubr.f32.gmra.mxu0 %v355
        %v1687 = vpop.f32.mrf.mxu0
        %v1688 = vadd.f32 0.0, %v1687
        %v1689 = vpop.f32.mrf.mxu0
        %1690 = vdwg.mxu0
        %s1691 = scalar_lea.vmem %s2, 128
        %v1692 = vld [vmem:[%s1691] sm:$0xff]
        %v1693 = vld [vmem:[%s1691 + $0x8] sm:$0xff]
        %v1694 = vld [vmem:[%s1691 + $0x10] sm:$0xff]
        %v1695 = vld [vmem:[%s1691 + $0x18] sm:$0xff]
        %s1696 = scalar_lea.vmem %s3, 128
        %v1697 = vld [vmem:[%s1696] sm:$0xff]
        %v1698 = vld [vmem:[%s1696 + $0x8] sm:$0xff]
        %v1699 = vld [vmem:[%s1696 + $0x10] sm:$0xff]
        %v1700 = vld [vmem:[%s1696 + $0x18] sm:$0xff]
        %v1702 = vsel %vm320, %v1598, 0
        %v1705 = vsel %vm320, %v1599, 0
        %v1708 = vsel %vm320, %v1600, 0
        %v1711 = vsel %vm320, %v1601, 0
        %1713 = vmatprep.subr.mxu0 0.0
        %1714 = vmatpush1.msra.mxu0 0.0
        %1715 = vmatprep.subr.mxu0 0.0
        %1716 = vmatpush1.msra.mxu0 0.0
        %1717 = vmatprep.subr.mxu0 0.0
        %1718 = vmatpush1.msra.mxu0 0.0
        %1719 = vmatprep.subr.mxu0 0.0
        %1720 = vmatpush1.msra.mxu0 0.0
        %1721 = vmatprep.subr.mxu0 0.0
        %1722 = vmatpush1.msra.mxu0 0.0
        %1723 = vmatprep.subr.mxu0 0.0
        %1724 = vmatpush1.msra.mxu0 0.0
        %1725 = vmatprep.subr.mxu0 0.0
        %1726 = vmatpush1.msra.mxu0 0.0
        %1727 = vmatprep.subr.mxu0 0.0
        %1728 = vmatpush1.msra.mxu0 0.0
        %1729 = vmatprep.subr.mxu0 0.0
        %1730 = vmatpush1.msra.mxu0 0.0
        %1731 = vmatprep.subr.mxu0 0.0
        %1732 = vmatpush1.msra.mxu0 0.0
        %1733 = vmatprep.subr.mxu0 0.0
        %1734 = vmatpush1.msra.mxu0 0.0
        %1735 = vmatprep.subr.mxu0 0.0
        %1736 = vmatpush1.msra.mxu0 0.0
        %1737 = vmatprep.subr.mxu0 0.0
        %1738 = vmatpush1.msra.mxu0 %v1700
        %1739 = vmatprep.subr.mxu0 0.0
        %1740 = vmatpush1.msra.mxu0 %v1699
        %1741 = vmatprep.subr.mxu0 0.0
        %1742 = vmatpush1.msra.mxu0 %v1698
        %1743 = vmatprep.subr.mxu0 0.0
        %1744 = vmatpush1.msra.mxu0 %v1697
        %1745 = vmatprep.subr.mxu0 0.0
        %1746 = vmatpush2.msra.mxu0 0.0
        %1747 = vmatprep.subr.mxu0 0.0
        %1748 = vmatpush2.msra.mxu0 0.0
        %1749 = vmatprep.subr.mxu0 0.0
        %1750 = vmatpush2.msra.mxu0 0.0
        %1751 = vmatprep.subr.mxu0 0.0
        %1752 = vmatpush2.msra.mxu0 0.0
        %1753 = vmatprep.subr.mxu0 0.0
        %1754 = vmatpush2.msra.mxu0 0.0
        %1755 = vmatprep.subr.mxu0 0.0
        %1756 = vmatpush2.msra.mxu0 0.0
        %1757 = vmatprep.subr.mxu0 0.0
        %1758 = vmatpush2.msra.mxu0 0.0
        %1759 = vmatprep.subr.mxu0 0.0
        %1760 = vmatpush2.msra.mxu0 0.0
        %1761 = vmatprep.subr.mxu0 0.0
        %1762 = vmatpush2.msra.mxu0 0.0
        %1763 = vmatprep.subr.mxu0 0.0
        %1764 = vmatpush2.msra.mxu0 0.0
        %1765 = vmatprep.subr.mxu0 0.0
        %1766 = vmatpush2.msra.mxu0 0.0
        %1767 = vmatprep.subr.mxu0 0.0
        %1768 = vmatpush2.msra.mxu0 0.0
        %1769 = vmatprep.subr.mxu0 0.0
        %1770 = vmatpush2.msra.mxu0 0.0
        %1771 = vmatprep.subr.mxu0 0.0
        %1772 = vmatpush2.msra.mxu0 0.0
        %1773 = vmatprep.subr.mxu0 0.0
        %1774 = vmatpush2.msra.mxu0 0.0
        %1775 = vmatprep.subr.mxu0 0.0
        %1776 = vmatpush2.msra.mxu0 0.0
        %1777 = vmatprep.mubr.f32.mxu0 0.0
        %1778 = vmatmul.mubr.f32.gmra.mxu0 %v1702
        %v1779 = vpop.f32.mrf.mxu0
        %v1780 = vadd.f32 0.0, %v1779
        %v1781 = vpop.f32.mrf.mxu0
        %1782 = vmatprep.mubr.f32.mxu0 0.0
        %1783 = vmatmul.mubr.f32.gmra.mxu0 %v1705
        %v1784 = vpop.f32.mrf.mxu0
        %v1785 = vadd.f32 0.0, %v1784
        %v1786 = vpop.f32.mrf.mxu0
        %1787 = vmatprep.mubr.f32.mxu0 0.0
        %1788 = vmatmul.mubr.f32.gmra.mxu0 %v1708
        %v1789 = vpop.f32.mrf.mxu0
        %v1790 = vadd.f32 0.0, %v1789
        %v1791 = vpop.f32.mrf.mxu0
        %1792 = vmatprep.mubr.f32.mxu0 0.0
        %1793 = vmatmul.mubr.f32.gmra.mxu0 %v1711
        %v1794 = vpop.f32.mrf.mxu0
        %v1795 = vadd.f32 0.0, %v1794
        %v1796 = vpop.f32.mrf.mxu0
        %1797 = vdwg.mxu0
        %v1799 = vsel %vm320, %v1673, 0
        %v1802 = vsel %vm320, %v1678, 0
        %v1805 = vsel %vm320, %v1683, 0
        %v1808 = vsel %vm320, %v1688, 0
        %1810 = vmatprep.subr.mxu0 0.0
        %1811 = vmatpush1.msra.mxu0 0.0
        %1812 = vmatprep.subr.mxu0 0.0
        %1813 = vmatpush1.msra.mxu0 0.0
        %1814 = vmatprep.subr.mxu0 0.0
        %1815 = vmatpush1.msra.mxu0 0.0
        %1816 = vmatprep.subr.mxu0 0.0
        %1817 = vmatpush1.msra.mxu0 0.0
        %1818 = vmatprep.subr.mxu0 0.0
        %1819 = vmatpush1.msra.mxu0 0.0
        %1820 = vmatprep.subr.mxu0 0.0
        %1821 = vmatpush1.msra.mxu0 0.0
        %1822 = vmatprep.subr.mxu0 0.0
        %1823 = vmatpush1.msra.mxu0 0.0
        %1824 = vmatprep.subr.mxu0 0.0
        %1825 = vmatpush1.msra.mxu0 0.0
        %1826 = vmatprep.subr.mxu0 0.0
        %1827 = vmatpush1.msra.mxu0 0.0
        %1828 = vmatprep.subr.mxu0 0.0
        %1829 = vmatpush1.msra.mxu0 0.0
        %1830 = vmatprep.subr.mxu0 0.0
        %1831 = vmatpush1.msra.mxu0 0.0
        %1832 = vmatprep.subr.mxu0 0.0
        %1833 = vmatpush1.msra.mxu0 0.0
        %1834 = vmatprep.subr.mxu0 0.0
        %1835 = vmatpush1.msra.mxu0 %v1695
        %1836 = vmatprep.subr.mxu0 0.0
        %1837 = vmatpush1.msra.mxu0 %v1694
        %1838 = vmatprep.subr.mxu0 0.0
        %1839 = vmatpush1.msra.mxu0 %v1693
        %1840 = vmatprep.subr.mxu0 0.0
        %1841 = vmatpush1.msra.mxu0 %v1692
        %1842 = vmatprep.subr.mxu0 0.0
        %1843 = vmatpush2.msra.mxu0 0.0
        %1844 = vmatprep.subr.mxu0 0.0
        %1845 = vmatpush2.msra.mxu0 0.0
        %1846 = vmatprep.subr.mxu0 0.0
        %1847 = vmatpush2.msra.mxu0 0.0
        %1848 = vmatprep.subr.mxu0 0.0
        %1849 = vmatpush2.msra.mxu0 0.0
        %1850 = vmatprep.subr.mxu0 0.0
        %1851 = vmatpush2.msra.mxu0 0.0
        %1852 = vmatprep.subr.mxu0 0.0
        %1853 = vmatpush2.msra.mxu0 0.0
        %1854 = vmatprep.subr.mxu0 0.0
        %1855 = vmatpush2.msra.mxu0 0.0
        %1856 = vmatprep.subr.mxu0 0.0
        %1857 = vmatpush2.msra.mxu0 0.0
        %1858 = vmatprep.subr.mxu0 0.0
        %1859 = vmatpush2.msra.mxu0 0.0
        %1860 = vmatprep.subr.mxu0 0.0
        %1861 = vmatpush2.msra.mxu0 0.0
        %1862 = vmatprep.subr.mxu0 0.0
        %1863 = vmatpush2.msra.mxu0 0.0
        %1864 = vmatprep.subr.mxu0 0.0
        %1865 = vmatpush2.msra.mxu0 0.0
        %1866 = vmatprep.subr.mxu0 0.0
        %1867 = vmatpush2.msra.mxu0 0.0
        %1868 = vmatprep.subr.mxu0 0.0
        %1869 = vmatpush2.msra.mxu0 0.0
        %1870 = vmatprep.subr.mxu0 0.0
        %1871 = vmatpush2.msra.mxu0 0.0
        %1872 = vmatprep.subr.mxu0 0.0
        %1873 = vmatpush2.msra.mxu0 0.0
        %1874 = vmatprep.mubr.f32.mxu0 0.0
        %1875 = vmatmul.mubr.f32.gmra.mxu0 %v1799
        %v1876 = vpop.f32.mrf.mxu0
        %v1877 = vadd.f32 %v1780, %v1876
        %v1878 = vpop.f32.mrf.mxu0
        %1879 = vmatprep.mubr.f32.mxu0 0.0
        %1880 = vmatmul.mubr.f32.gmra.mxu0 %v1802
        %v1881 = vpop.f32.mrf.mxu0
        %v1882 = vadd.f32 %v1785, %v1881
        %v1883 = vpop.f32.mrf.mxu0
        %1884 = vmatprep.mubr.f32.mxu0 0.0
        %1885 = vmatmul.mubr.f32.gmra.mxu0 %v1805
        %v1886 = vpop.f32.mrf.mxu0
        %v1887 = vadd.f32 %v1790, %v1886
        %v1888 = vpop.f32.mrf.mxu0
        %1889 = vmatprep.mubr.f32.mxu0 0.0
        %1890 = vmatmul.mubr.f32.gmra.mxu0 %v1808
        %v1891 = vpop.f32.mrf.mxu0
        %v1892 = vadd.f32 %v1795, %v1891
        %v1893 = vpop.f32.mrf.mxu0
        %1894 = vdwg.mxu0
        %s1895 = scalar_lea.vmem %s4, 4
        %v1896 = vld [vmem:[%s1895] sm:$0x1]
        %v1898 = vlaneseq
        %v1899 = vshrl.u32 %v1898, 7
        %v1900 = vsub.s32 0, %v1899
        %v1901 = vrot.slane %v1896, %v1900
        %v1903 = vadd.f32 %v1877, %v1901
        %v1904 = vadd.f32 %v1882, %v1901
        %v1905 = vadd.f32 %v1887, %v1901
        %v1906 = vadd.f32 %v1892, %v1901
        %v1907 = vmax.f32 %v1903, 0.0
        %v1908 = vmax.f32 %v1904, 0.0
        %v1909 = vmax.f32 %v1905, 0.0
        %v1910 = vmax.f32 %v1906, 0.0
        %v1911 = vadd.f32 %v1907, %v1598
        %v1912 = vadd.f32 %v1908, %v1599
        %v1913 = vadd.f32 %v1909, %v1600
        %v1914 = vadd.f32 %v1910, %v1601
        %v1915 = vmul.f32 %v333, %v1911
        %v1916 = vmul.f32 %v334, %v1912
        %v1917 = vmul.f32 %v335, %v1913
        %v1918 = vmul.f32 %v336, %v1914
        %1919 = vmatprep.subr.mxu0 0.0
        %1920 = vmatpush1.msra.mxu0 0.0
        %1921 = vmatprep.subr.mxu0 0.0
        %1922 = vmatpush1.msra.mxu0 0.0
        %1923 = vmatprep.subr.mxu0 0.0
        %1924 = vmatpush1.msra.mxu0 0.0
        %1925 = vmatprep.subr.mxu0 0.0
        %1926 = vmatpush1.msra.mxu0 0.0
        %1927 = vmatprep.subr.mxu0 0.0
        %1928 = vmatpush1.msra.mxu0 0.0
        %1929 = vmatprep.subr.mxu0 0.0
        %1930 = vmatpush1.msra.mxu0 0.0
        %1931 = vmatprep.subr.mxu0 0.0
        %1932 = vmatpush1.msra.mxu0 0.0
        %1933 = vmatprep.subr.mxu0 0.0
        %1934 = vmatpush1.msra.mxu0 0.0
        %1935 = vmatprep.subr.mxu0 0.0
        %1936 = vmatpush1.msra.mxu0 0.0
        %1937 = vmatprep.subr.mxu0 0.0
        %1938 = vmatpush1.msra.mxu0 0.0
        %1939 = vmatprep.subr.mxu0 0.0
        %1940 = vmatpush1.msra.mxu0 0.0
        %1941 = vmatprep.subr.mxu0 0.0
        %1942 = vmatpush1.msra.mxu0 0.0
        %1943 = vmatprep.subr.mxu0 0.0
        %1944 = vmatpush1.msra.mxu0 %v1918
        %1945 = vmatprep.subr.mxu0 0.0
        %1946 = vmatpush1.msra.mxu0 %v1917
        %1947 = vmatprep.subr.mxu0 0.0
        %1948 = vmatpush1.msra.mxu0 %v1916
        %1949 = vmatprep.subr.mxu0 0.0
        %1950 = vmatpush1.msra.mxu0 %v1915
        %1951 = vmatprep.subr.mxu0 0.0
        %1952 = vmatpush2.msra.mxu0 0.0
        %1953 = vmatprep.subr.mxu0 0.0
        %1954 = vmatpush2.msra.mxu0 0.0
        %1955 = vmatprep.subr.mxu0 0.0
        %1956 = vmatpush2.msra.mxu0 0.0
        %1957 = vmatprep.subr.mxu0 0.0
        %1958 = vmatpush2.msra.mxu0 0.0
        %1959 = vmatprep.subr.mxu0 0.0
        %1960 = vmatpush2.msra.mxu0 0.0
        %1961 = vmatprep.subr.mxu0 0.0
        %1962 = vmatpush2.msra.mxu0 0.0
        %1963 = vmatprep.subr.mxu0 0.0
        %1964 = vmatpush2.msra.mxu0 0.0
        %1965 = vmatprep.subr.mxu0 0.0
        %1966 = vmatpush2.msra.mxu0 0.0
        %1967 = vmatprep.subr.mxu0 0.0
        %1968 = vmatpush2.msra.mxu0 0.0
        %1969 = vmatprep.subr.mxu0 0.0
        %1970 = vmatpush2.msra.mxu0 0.0
        %1971 = vmatprep.subr.mxu0 0.0
        %1972 = vmatpush2.msra.mxu0 0.0
        %1973 = vmatprep.subr.mxu0 0.0
        %1974 = vmatpush2.msra.mxu0 0.0
        %1975 = vmatprep.subr.mxu0 0.0
        %1976 = vmatpush2.msra.mxu0 0.0
        %1977 = vmatprep.subr.mxu0 0.0
        %1978 = vmatpush2.msra.mxu0 0.0
        %1979 = vmatprep.subr.mxu0 0.0
        %1980 = vmatpush2.msra.mxu0 0.0
        %1981 = vmatprep.subr.mxu0 0.0
        %1982 = vmatpush2.msra.mxu0 0.0
        %1983 = vmatprep.mubr.f32.mxu0 0.0
        %1984 = vmatmul.mubr.f32.gmra.mxu0 %v346
        %v1985 = vpop.f32.mrf.mxu0
        %v1986 = vadd.f32 0.0, %v1985
        %v1987 = vpop.f32.mrf.mxu0
        %1988 = vmatprep.mubr.f32.mxu0 0.0
        %1989 = vmatmul.mubr.f32.gmra.mxu0 %v349
        %v1990 = vpop.f32.mrf.mxu0
        %v1991 = vadd.f32 0.0, %v1990
        %v1992 = vpop.f32.mrf.mxu0
        %1993 = vmatprep.mubr.f32.mxu0 0.0
        %1994 = vmatmul.mubr.f32.gmra.mxu0 %v352
        %v1995 = vpop.f32.mrf.mxu0
        %v1996 = vadd.f32 0.0, %v1995
        %v1997 = vpop.f32.mrf.mxu0
        %1998 = vmatprep.mubr.f32.mxu0 0.0
        %1999 = vmatmul.mubr.f32.gmra.mxu0 %v355
        %v2000 = vpop.f32.mrf.mxu0
        %v2001 = vadd.f32 0.0, %v2000
        %v2002 = vpop.f32.mrf.mxu0
        %2003 = vdwg.mxu0
        %s2004 = scalar_lea.vmem %s2, 160
        %v2005 = vld [vmem:[%s2004] sm:$0xff]
        %v2006 = vld [vmem:[%s2004 + $0x8] sm:$0xff]
        %v2007 = vld [vmem:[%s2004 + $0x10] sm:$0xff]
        %v2008 = vld [vmem:[%s2004 + $0x18] sm:$0xff]
        %s2009 = scalar_lea.vmem %s3, 160
        %v2010 = vld [vmem:[%s2009] sm:$0xff]
        %v2011 = vld [vmem:[%s2009 + $0x8] sm:$0xff]
        %v2012 = vld [vmem:[%s2009 + $0x10] sm:$0xff]
        %v2013 = vld [vmem:[%s2009 + $0x18] sm:$0xff]
        %v2015 = vsel %vm320, %v1911, 0
        %v2018 = vsel %vm320, %v1912, 0
        %v2021 = vsel %vm320, %v1913, 0
        %v2024 = vsel %vm320, %v1914, 0
        %2026 = vmatprep.subr.mxu0 0.0
        %2027 = vmatpush1.msra.mxu0 0.0
        %2028 = vmatprep.subr.mxu0 0.0
        %2029 = vmatpush1.msra.mxu0 0.0
        %2030 = vmatprep.subr.mxu0 0.0
        %2031 = vmatpush1.msra.mxu0 0.0
        %2032 = vmatprep.subr.mxu0 0.0
        %2033 = vmatpush1.msra.mxu0 0.0
        %2034 = vmatprep.subr.mxu0 0.0
        %2035 = vmatpush1.msra.mxu0 0.0
        %2036 = vmatprep.subr.mxu0 0.0
        %2037 = vmatpush1.msra.mxu0 0.0
        %2038 = vmatprep.subr.mxu0 0.0
        %2039 = vmatpush1.msra.mxu0 0.0
        %2040 = vmatprep.subr.mxu0 0.0
        %2041 = vmatpush1.msra.mxu0 0.0
        %2042 = vmatprep.subr.mxu0 0.0
        %2043 = vmatpush1.msra.mxu0 0.0
        %2044 = vmatprep.subr.mxu0 0.0
        %2045 = vmatpush1.msra.mxu0 0.0
        %2046 = vmatprep.subr.mxu0 0.0
        %2047 = vmatpush1.msra.mxu0 0.0
        %2048 = vmatprep.subr.mxu0 0.0
        %2049 = vmatpush1.msra.mxu0 0.0
        %2050 = vmatprep.subr.mxu0 0.0
        %2051 = vmatpush1.msra.mxu0 %v2013
        %2052 = vmatprep.subr.mxu0 0.0
        %2053 = vmatpush1.msra.mxu0 %v2012
        %2054 = vmatprep.subr.mxu0 0.0
        %2055 = vmatpush1.msra.mxu0 %v2011
        %2056 = vmatprep.subr.mxu0 0.0
        %2057 = vmatpush1.msra.mxu0 %v2010
        %2058 = vmatprep.subr.mxu0 0.0
        %2059 = vmatpush2.msra.mxu0 0.0
        %2060 = vmatprep.subr.mxu0 0.0
        %2061 = vmatpush2.msra.mxu0 0.0
        %2062 = vmatprep.subr.mxu0 0.0
        %2063 = vmatpush2.msra.mxu0 0.0
        %2064 = vmatprep.subr.mxu0 0.0
        %2065 = vmatpush2.msra.mxu0 0.0
        %2066 = vmatprep.subr.mxu0 0.0
        %2067 = vmatpush2.msra.mxu0 0.0
        %2068 = vmatprep.subr.mxu0 0.0
        %2069 = vmatpush2.msra.mxu0 0.0
        %2070 = vmatprep.subr.mxu0 0.0
        %2071 = vmatpush2.msra.mxu0 0.0
        %2072 = vmatprep.subr.mxu0 0.0
        %2073 = vmatpush2.msra.mxu0 0.0
        %2074 = vmatprep.subr.mxu0 0.0
        %2075 = vmatpush2.msra.mxu0 0.0
        %2076 = vmatprep.subr.mxu0 0.0
        %2077 = vmatpush2.msra.mxu0 0.0
        %2078 = vmatprep.subr.mxu0 0.0
        %2079 = vmatpush2.msra.mxu0 0.0
        %2080 = vmatprep.subr.mxu0 0.0
        %2081 = vmatpush2.msra.mxu0 0.0
        %2082 = vmatprep.subr.mxu0 0.0
        %2083 = vmatpush2.msra.mxu0 0.0
        %2084 = vmatprep.subr.mxu0 0.0
        %2085 = vmatpush2.msra.mxu0 0.0
        %2086 = vmatprep.subr.mxu0 0.0
        %2087 = vmatpush2.msra.mxu0 0.0
        %2088 = vmatprep.subr.mxu0 0.0
        %2089 = vmatpush2.msra.mxu0 0.0
        %2090 = vmatprep.mubr.f32.mxu0 0.0
        %2091 = vmatmul.mubr.f32.gmra.mxu0 %v2015
        %v2092 = vpop.f32.mrf.mxu0
        %v2093 = vadd.f32 0.0, %v2092
        %v2094 = vpop.f32.mrf.mxu0
        %2095 = vmatprep.mubr.f32.mxu0 0.0
        %2096 = vmatmul.mubr.f32.gmra.mxu0 %v2018
        %v2097 = vpop.f32.mrf.mxu0
        %v2098 = vadd.f32 0.0, %v2097
        %v2099 = vpop.f32.mrf.mxu0
        %2100 = vmatprep.mubr.f32.mxu0 0.0
        %2101 = vmatmul.mubr.f32.gmra.mxu0 %v2021
        %v2102 = vpop.f32.mrf.mxu0
        %v2103 = vadd.f32 0.0, %v2102
        %v2104 = vpop.f32.mrf.mxu0
        %2105 = vmatprep.mubr.f32.mxu0 0.0
        %2106 = vmatmul.mubr.f32.gmra.mxu0 %v2024
        %v2107 = vpop.f32.mrf.mxu0
        %v2108 = vadd.f32 0.0, %v2107
        %v2109 = vpop.f32.mrf.mxu0
        %2110 = vdwg.mxu0
        %v2112 = vsel %vm320, %v1986, 0
        %v2115 = vsel %vm320, %v1991, 0
        %v2118 = vsel %vm320, %v1996, 0
        %v2121 = vsel %vm320, %v2001, 0
        %2123 = vmatprep.subr.mxu0 0.0
        %2124 = vmatpush1.msra.mxu0 0.0
        %2125 = vmatprep.subr.mxu0 0.0
        %2126 = vmatpush1.msra.mxu0 0.0
        %2127 = vmatprep.subr.mxu0 0.0
        %2128 = vmatpush1.msra.mxu0 0.0
        %2129 = vmatprep.subr.mxu0 0.0
        %2130 = vmatpush1.msra.mxu0 0.0
        %2131 = vmatprep.subr.mxu0 0.0
        %2132 = vmatpush1.msra.mxu0 0.0
        %2133 = vmatprep.subr.mxu0 0.0
        %2134 = vmatpush1.msra.mxu0 0.0
        %2135 = vmatprep.subr.mxu0 0.0
        %2136 = vmatpush1.msra.mxu0 0.0
        %2137 = vmatprep.subr.mxu0 0.0
        %2138 = vmatpush1.msra.mxu0 0.0
        %2139 = vmatprep.subr.mxu0 0.0
        %2140 = vmatpush1.msra.mxu0 0.0
        %2141 = vmatprep.subr.mxu0 0.0
        %2142 = vmatpush1.msra.mxu0 0.0
        %2143 = vmatprep.subr.mxu0 0.0
        %2144 = vmatpush1.msra.mxu0 0.0
        %2145 = vmatprep.subr.mxu0 0.0
        %2146 = vmatpush1.msra.mxu0 0.0
        %2147 = vmatprep.subr.mxu0 0.0
        %2148 = vmatpush1.msra.mxu0 %v2008
        %2149 = vmatprep.subr.mxu0 0.0
        %2150 = vmatpush1.msra.mxu0 %v2007
        %2151 = vmatprep.subr.mxu0 0.0
        %2152 = vmatpush1.msra.mxu0 %v2006
        %2153 = vmatprep.subr.mxu0 0.0
        %2154 = vmatpush1.msra.mxu0 %v2005
        %2155 = vmatprep.subr.mxu0 0.0
        %2156 = vmatpush2.msra.mxu0 0.0
        %2157 = vmatprep.subr.mxu0 0.0
        %2158 = vmatpush2.msra.mxu0 0.0
        %2159 = vmatprep.subr.mxu0 0.0
        %2160 = vmatpush2.msra.mxu0 0.0
        %2161 = vmatprep.subr.mxu0 0.0
        %2162 = vmatpush2.msra.mxu0 0.0
        %2163 = vmatprep.subr.mxu0 0.0
        %2164 = vmatpush2.msra.mxu0 0.0
        %2165 = vmatprep.subr.mxu0 0.0
        %2166 = vmatpush2.msra.mxu0 0.0
        %2167 = vmatprep.subr.mxu0 0.0
        %2168 = vmatpush2.msra.mxu0 0.0
        %2169 = vmatprep.subr.mxu0 0.0
        %2170 = vmatpush2.msra.mxu0 0.0
        %2171 = vmatprep.subr.mxu0 0.0
        %2172 = vmatpush2.msra.mxu0 0.0
        %2173 = vmatprep.subr.mxu0 0.0
        %2174 = vmatpush2.msra.mxu0 0.0
        %2175 = vmatprep.subr.mxu0 0.0
        %2176 = vmatpush2.msra.mxu0 0.0
        %2177 = vmatprep.subr.mxu0 0.0
        %2178 = vmatpush2.msra.mxu0 0.0
        %2179 = vmatprep.subr.mxu0 0.0
        %2180 = vmatpush2.msra.mxu0 0.0
        %2181 = vmatprep.subr.mxu0 0.0
        %2182 = vmatpush2.msra.mxu0 0.0
        %2183 = vmatprep.subr.mxu0 0.0
        %2184 = vmatpush2.msra.mxu0 0.0
        %2185 = vmatprep.subr.mxu0 0.0
        %2186 = vmatpush2.msra.mxu0 0.0
        %2187 = vmatprep.mubr.f32.mxu0 0.0
        %2188 = vmatmul.mubr.f32.gmra.mxu0 %v2112
        %v2189 = vpop.f32.mrf.mxu0
        %v2190 = vadd.f32 %v2093, %v2189
        %v2191 = vpop.f32.mrf.mxu0
        %2192 = vmatprep.mubr.f32.mxu0 0.0
        %2193 = vmatmul.mubr.f32.gmra.mxu0 %v2115
        %v2194 = vpop.f32.mrf.mxu0
        %v2195 = vadd.f32 %v2098, %v2194
        %v2196 = vpop.f32.mrf.mxu0
        %2197 = vmatprep.mubr.f32.mxu0 0.0
        %2198 = vmatmul.mubr.f32.gmra.mxu0 %v2118
        %v2199 = vpop.f32.mrf.mxu0
        %v2200 = vadd.f32 %v2103, %v2199
        %v2201 = vpop.f32.mrf.mxu0
        %2202 = vmatprep.mubr.f32.mxu0 0.0
        %2203 = vmatmul.mubr.f32.gmra.mxu0 %v2121
        %v2204 = vpop.f32.mrf.mxu0
        %v2205 = vadd.f32 %v2108, %v2204
        %v2206 = vpop.f32.mrf.mxu0
        %2207 = vdwg.mxu0
        %s2208 = scalar_lea.vmem %s4, 5
        %v2209 = vld [vmem:[%s2208] sm:$0x1]
        %v2211 = vlaneseq
        %v2212 = vshrl.u32 %v2211, 7
        %v2213 = vsub.s32 0, %v2212
        %v2214 = vrot.slane %v2209, %v2213
        %v2216 = vadd.f32 %v2190, %v2214
        %v2217 = vadd.f32 %v2195, %v2214
        %v2218 = vadd.f32 %v2200, %v2214
        %v2219 = vadd.f32 %v2205, %v2214
        %v2220 = vmax.f32 %v2216, 0.0
        %v2221 = vmax.f32 %v2217, 0.0
        %v2222 = vmax.f32 %v2218, 0.0
        %v2223 = vmax.f32 %v2219, 0.0
        %v2224 = vadd.f32 %v2220, %v1911
        %v2225 = vadd.f32 %v2221, %v1912
        %v2226 = vadd.f32 %v2222, %v1913
        %v2227 = vadd.f32 %v2223, %v1914
        %v2228 = vmul.f32 %v333, %v2224
        %v2229 = vmul.f32 %v334, %v2225
        %v2230 = vmul.f32 %v335, %v2226
        %v2231 = vmul.f32 %v336, %v2227
        %2232 = vmatprep.subr.mxu0 0.0
        %2233 = vmatpush1.msra.mxu0 0.0
        %2234 = vmatprep.subr.mxu0 0.0
        %2235 = vmatpush1.msra.mxu0 0.0
        %2236 = vmatprep.subr.mxu0 0.0
        %2237 = vmatpush1.msra.mxu0 0.0
        %2238 = vmatprep.subr.mxu0 0.0
        %2239 = vmatpush1.msra.mxu0 0.0
        %2240 = vmatprep.subr.mxu0 0.0
        %2241 = vmatpush1.msra.mxu0 0.0
        %2242 = vmatprep.subr.mxu0 0.0
        %2243 = vmatpush1.msra.mxu0 0.0
        %2244 = vmatprep.subr.mxu0 0.0
        %2245 = vmatpush1.msra.mxu0 0.0
        %2246 = vmatprep.subr.mxu0 0.0
        %2247 = vmatpush1.msra.mxu0 0.0
        %2248 = vmatprep.subr.mxu0 0.0
        %2249 = vmatpush1.msra.mxu0 0.0
        %2250 = vmatprep.subr.mxu0 0.0
        %2251 = vmatpush1.msra.mxu0 0.0
        %2252 = vmatprep.subr.mxu0 0.0
        %2253 = vmatpush1.msra.mxu0 0.0
        %2254 = vmatprep.subr.mxu0 0.0
        %2255 = vmatpush1.msra.mxu0 0.0
        %2256 = vmatprep.subr.mxu0 0.0
        %2257 = vmatpush1.msra.mxu0 %v2231
        %2258 = vmatprep.subr.mxu0 0.0
        %2259 = vmatpush1.msra.mxu0 %v2230
        %2260 = vmatprep.subr.mxu0 0.0
        %2261 = vmatpush1.msra.mxu0 %v2229
        %2262 = vmatprep.subr.mxu0 0.0
        %2263 = vmatpush1.msra.mxu0 %v2228
        %2264 = vmatprep.subr.mxu0 0.0
        %2265 = vmatpush2.msra.mxu0 0.0
        %2266 = vmatprep.subr.mxu0 0.0
        %2267 = vmatpush2.msra.mxu0 0.0
        %2268 = vmatprep.subr.mxu0 0.0
        %2269 = vmatpush2.msra.mxu0 0.0
        %2270 = vmatprep.subr.mxu0 0.0
        %2271 = vmatpush2.msra.mxu0 0.0
        %2272 = vmatprep.subr.mxu0 0.0
        %2273 = vmatpush2.msra.mxu0 0.0
        %2274 = vmatprep.subr.mxu0 0.0
        %2275 = vmatpush2.msra.mxu0 0.0
        %2276 = vmatprep.subr.mxu0 0.0
        %2277 = vmatpush2.msra.mxu0 0.0
        %2278 = vmatprep.subr.mxu0 0.0
        %2279 = vmatpush2.msra.mxu0 0.0
        %2280 = vmatprep.subr.mxu0 0.0
        %2281 = vmatpush2.msra.mxu0 0.0
        %2282 = vmatprep.subr.mxu0 0.0
        %2283 = vmatpush2.msra.mxu0 0.0
        %2284 = vmatprep.subr.mxu0 0.0
        %2285 = vmatpush2.msra.mxu0 0.0
        %2286 = vmatprep.subr.mxu0 0.0
        %2287 = vmatpush2.msra.mxu0 0.0
        %2288 = vmatprep.subr.mxu0 0.0
        %2289 = vmatpush2.msra.mxu0 0.0
        %2290 = vmatprep.subr.mxu0 0.0
        %2291 = vmatpush2.msra.mxu0 0.0
        %2292 = vmatprep.subr.mxu0 0.0
        %2293 = vmatpush2.msra.mxu0 0.0
        %2294 = vmatprep.subr.mxu0 0.0
        %2295 = vmatpush2.msra.mxu0 0.0
        %2296 = vmatprep.mubr.f32.mxu0 0.0
        %2297 = vmatmul.mubr.f32.gmra.mxu0 %v346
        %v2298 = vpop.f32.mrf.mxu0
        %v2299 = vadd.f32 0.0, %v2298
        %v2300 = vpop.f32.mrf.mxu0
        %2301 = vmatprep.mubr.f32.mxu0 0.0
        %2302 = vmatmul.mubr.f32.gmra.mxu0 %v349
        %v2303 = vpop.f32.mrf.mxu0
        %v2304 = vadd.f32 0.0, %v2303
        %v2305 = vpop.f32.mrf.mxu0
        %2306 = vmatprep.mubr.f32.mxu0 0.0
        %2307 = vmatmul.mubr.f32.gmra.mxu0 %v352
        %v2308 = vpop.f32.mrf.mxu0
        %v2309 = vadd.f32 0.0, %v2308
        %v2310 = vpop.f32.mrf.mxu0
        %2311 = vmatprep.mubr.f32.mxu0 0.0
        %2312 = vmatmul.mubr.f32.gmra.mxu0 %v355
        %v2313 = vpop.f32.mrf.mxu0
        %v2314 = vadd.f32 0.0, %v2313
        %v2315 = vpop.f32.mrf.mxu0
        %2316 = vdwg.mxu0
        %s2317 = scalar_lea.vmem %s2, 192
        %v2318 = vld [vmem:[%s2317] sm:$0xff]
        %v2319 = vld [vmem:[%s2317 + $0x8] sm:$0xff]
        %v2320 = vld [vmem:[%s2317 + $0x10] sm:$0xff]
        %v2321 = vld [vmem:[%s2317 + $0x18] sm:$0xff]
        %s2322 = scalar_lea.vmem %s3, 192
        %v2323 = vld [vmem:[%s2322] sm:$0xff]
        %v2324 = vld [vmem:[%s2322 + $0x8] sm:$0xff]
        %v2325 = vld [vmem:[%s2322 + $0x10] sm:$0xff]
        %v2326 = vld [vmem:[%s2322 + $0x18] sm:$0xff]
        %v2328 = vsel %vm320, %v2224, 0
        %v2331 = vsel %vm320, %v2225, 0
        %v2334 = vsel %vm320, %v2226, 0
        %v2337 = vsel %vm320, %v2227, 0
        %2339 = vmatprep.subr.mxu0 0.0
        %2340 = vmatpush1.msra.mxu0 0.0
        %2341 = vmatprep.subr.mxu0 0.0
        %2342 = vmatpush1.msra.mxu0 0.0
        %2343 = vmatprep.subr.mxu0 0.0
        %2344 = vmatpush1.msra.mxu0 0.0
        %2345 = vmatprep.subr.mxu0 0.0
        %2346 = vmatpush1.msra.mxu0 0.0
        %2347 = vmatprep.subr.mxu0 0.0
        %2348 = vmatpush1.msra.mxu0 0.0
        %2349 = vmatprep.subr.mxu0 0.0
        %2350 = vmatpush1.msra.mxu0 0.0
        %2351 = vmatprep.subr.mxu0 0.0
        %2352 = vmatpush1.msra.mxu0 0.0
        %2353 = vmatprep.subr.mxu0 0.0
        %2354 = vmatpush1.msra.mxu0 0.0
        %2355 = vmatprep.subr.mxu0 0.0
        %2356 = vmatpush1.msra.mxu0 0.0
        %2357 = vmatprep.subr.mxu0 0.0
        %2358 = vmatpush1.msra.mxu0 0.0
        %2359 = vmatprep.subr.mxu0 0.0
        %2360 = vmatpush1.msra.mxu0 0.0
        %2361 = vmatprep.subr.mxu0 0.0
        %2362 = vmatpush1.msra.mxu0 0.0
        %2363 = vmatprep.subr.mxu0 0.0
        %2364 = vmatpush1.msra.mxu0 %v2326
        %2365 = vmatprep.subr.mxu0 0.0
        %2366 = vmatpush1.msra.mxu0 %v2325
        %2367 = vmatprep.subr.mxu0 0.0
        %2368 = vmatpush1.msra.mxu0 %v2324
        %2369 = vmatprep.subr.mxu0 0.0
        %2370 = vmatpush1.msra.mxu0 %v2323
        %2371 = vmatprep.subr.mxu0 0.0
        %2372 = vmatpush2.msra.mxu0 0.0
        %2373 = vmatprep.subr.mxu0 0.0
        %2374 = vmatpush2.msra.mxu0 0.0
        %2375 = vmatprep.subr.mxu0 0.0
        %2376 = vmatpush2.msra.mxu0 0.0
        %2377 = vmatprep.subr.mxu0 0.0
        %2378 = vmatpush2.msra.mxu0 0.0
        %2379 = vmatprep.subr.mxu0 0.0
        %2380 = vmatpush2.msra.mxu0 0.0
        %2381 = vmatprep.subr.mxu0 0.0
        %2382 = vmatpush2.msra.mxu0 0.0
        %2383 = vmatprep.subr.mxu0 0.0
        %2384 = vmatpush2.msra.mxu0 0.0
        %2385 = vmatprep.subr.mxu0 0.0
        %2386 = vmatpush2.msra.mxu0 0.0
        %2387 = vmatprep.subr.mxu0 0.0
        %2388 = vmatpush2.msra.mxu0 0.0
        %2389 = vmatprep.subr.mxu0 0.0
        %2390 = vmatpush2.msra.mxu0 0.0
        %2391 = vmatprep.subr.mxu0 0.0
        %2392 = vmatpush2.msra.mxu0 0.0
        %2393 = vmatprep.subr.mxu0 0.0
        %2394 = vmatpush2.msra.mxu0 0.0
        %2395 = vmatprep.subr.mxu0 0.0
        %2396 = vmatpush2.msra.mxu0 0.0
        %2397 = vmatprep.subr.mxu0 0.0
        %2398 = vmatpush2.msra.mxu0 0.0
        %2399 = vmatprep.subr.mxu0 0.0
        %2400 = vmatpush2.msra.mxu0 0.0
        %2401 = vmatprep.subr.mxu0 0.0
        %2402 = vmatpush2.msra.mxu0 0.0
        %2403 = vmatprep.mubr.f32.mxu0 0.0
        %2404 = vmatmul.mubr.f32.gmra.mxu0 %v2328
        %v2405 = vpop.f32.mrf.mxu0
        %v2406 = vadd.f32 0.0, %v2405
        %v2407 = vpop.f32.mrf.mxu0
        %2408 = vmatprep.mubr.f32.mxu0 0.0
        %2409 = vmatmul.mubr.f32.gmra.mxu0 %v2331
        %v2410 = vpop.f32.mrf.mxu0
        %v2411 = vadd.f32 0.0, %v2410
        %v2412 = vpop.f32.mrf.mxu0
        %2413 = vmatprep.mubr.f32.mxu0 0.0
        %2414 = vmatmul.mubr.f32.gmra.mxu0 %v2334
        %v2415 = vpop.f32.mrf.mxu0
        %v2416 = vadd.f32 0.0, %v2415
        %v2417 = vpop.f32.mrf.mxu0
        %2418 = vmatprep.mubr.f32.mxu0 0.0
        %2419 = vmatmul.mubr.f32.gmra.mxu0 %v2337
        %v2420 = vpop.f32.mrf.mxu0
        %v2421 = vadd.f32 0.0, %v2420
        %v2422 = vpop.f32.mrf.mxu0
        %2423 = vdwg.mxu0
        %v2425 = vsel %vm320, %v2299, 0
        %v2428 = vsel %vm320, %v2304, 0
        %v2431 = vsel %vm320, %v2309, 0
        %v2434 = vsel %vm320, %v2314, 0
        %2436 = vmatprep.subr.mxu0 0.0
        %2437 = vmatpush1.msra.mxu0 0.0
        %2438 = vmatprep.subr.mxu0 0.0
        %2439 = vmatpush1.msra.mxu0 0.0
        %2440 = vmatprep.subr.mxu0 0.0
        %2441 = vmatpush1.msra.mxu0 0.0
        %2442 = vmatprep.subr.mxu0 0.0
        %2443 = vmatpush1.msra.mxu0 0.0
        %2444 = vmatprep.subr.mxu0 0.0
        %2445 = vmatpush1.msra.mxu0 0.0
        %2446 = vmatprep.subr.mxu0 0.0
        %2447 = vmatpush1.msra.mxu0 0.0
        %2448 = vmatprep.subr.mxu0 0.0
        %2449 = vmatpush1.msra.mxu0 0.0
        %2450 = vmatprep.subr.mxu0 0.0
        %2451 = vmatpush1.msra.mxu0 0.0
        %2452 = vmatprep.subr.mxu0 0.0
        %2453 = vmatpush1.msra.mxu0 0.0
        %2454 = vmatprep.subr.mxu0 0.0
        %2455 = vmatpush1.msra.mxu0 0.0
        %2456 = vmatprep.subr.mxu0 0.0
        %2457 = vmatpush1.msra.mxu0 0.0
        %2458 = vmatprep.subr.mxu0 0.0
        %2459 = vmatpush1.msra.mxu0 0.0
        %2460 = vmatprep.subr.mxu0 0.0
        %2461 = vmatpush1.msra.mxu0 %v2321
        %2462 = vmatprep.subr.mxu0 0.0
        %2463 = vmatpush1.msra.mxu0 %v2320
        %2464 = vmatprep.subr.mxu0 0.0
        %2465 = vmatpush1.msra.mxu0 %v2319
        %2466 = vmatprep.subr.mxu0 0.0
        %2467 = vmatpush1.msra.mxu0 %v2318
        %2468 = vmatprep.subr.mxu0 0.0
        %2469 = vmatpush2.msra.mxu0 0.0
        %2470 = vmatprep.subr.mxu0 0.0
        %2471 = vmatpush2.msra.mxu0 0.0
        %2472 = vmatprep.subr.mxu0 0.0
        %2473 = vmatpush2.msra.mxu0 0.0
        %2474 = vmatprep.subr.mxu0 0.0
        %2475 = vmatpush2.msra.mxu0 0.0
        %2476 = vmatprep.subr.mxu0 0.0
        %2477 = vmatpush2.msra.mxu0 0.0
        %2478 = vmatprep.subr.mxu0 0.0
        %2479 = vmatpush2.msra.mxu0 0.0
        %2480 = vmatprep.subr.mxu0 0.0
        %2481 = vmatpush2.msra.mxu0 0.0
        %2482 = vmatprep.subr.mxu0 0.0
        %2483 = vmatpush2.msra.mxu0 0.0
        %2484 = vmatprep.subr.mxu0 0.0
        %2485 = vmatpush2.msra.mxu0 0.0
        %2486 = vmatprep.subr.mxu0 0.0
        %2487 = vmatpush2.msra.mxu0 0.0
        %2488 = vmatprep.subr.mxu0 0.0
        %2489 = vmatpush2.msra.mxu0 0.0
        %2490 = vmatprep.subr.mxu0 0.0
        %2491 = vmatpush2.msra.mxu0 0.0
        %2492 = vmatprep.subr.mxu0 0.0
        %2493 = vmatpush2.msra.mxu0 0.0
        %2494 = vmatprep.subr.mxu0 0.0
        %2495 = vmatpush2.msra.mxu0 0.0
        %2496 = vmatprep.subr.mxu0 0.0
        %2497 = vmatpush2.msra.mxu0 0.0
        %2498 = vmatprep.subr.mxu0 0.0
        %2499 = vmatpush2.msra.mxu0 0.0
        %2500 = vmatprep.mubr.f32.mxu0 0.0
        %2501 = vmatmul.mubr.f32.gmra.mxu0 %v2425
        %v2502 = vpop.f32.mrf.mxu0
        %v2503 = vadd.f32 %v2406, %v2502
        %v2504 = vpop.f32.mrf.mxu0
        %2505 = vmatprep.mubr.f32.mxu0 0.0
        %2506 = vmatmul.mubr.f32.gmra.mxu0 %v2428
        %v2507 = vpop.f32.mrf.mxu0
        %v2508 = vadd.f32 %v2411, %v2507
        %v2509 = vpop.f32.mrf.mxu0
        %2510 = vmatprep.mubr.f32.mxu0 0.0
        %2511 = vmatmul.mubr.f32.gmra.mxu0 %v2431
        %v2512 = vpop.f32.mrf.mxu0
        %v2513 = vadd.f32 %v2416, %v2512
        %v2514 = vpop.f32.mrf.mxu0
        %2515 = vmatprep.mubr.f32.mxu0 0.0
        %2516 = vmatmul.mubr.f32.gmra.mxu0 %v2434
        %v2517 = vpop.f32.mrf.mxu0
        %v2518 = vadd.f32 %v2421, %v2517
        %v2519 = vpop.f32.mrf.mxu0
        %2520 = vdwg.mxu0
        %s2521 = scalar_lea.vmem %s4, 6
        %v2522 = vld [vmem:[%s2521] sm:$0x1]
        %v2524 = vlaneseq
        %v2525 = vshrl.u32 %v2524, 7
        %v2526 = vsub.s32 0, %v2525
        %v2527 = vrot.slane %v2522, %v2526
        %v2529 = vadd.f32 %v2503, %v2527
        %v2530 = vadd.f32 %v2508, %v2527
        %v2531 = vadd.f32 %v2513, %v2527
        %v2532 = vadd.f32 %v2518, %v2527
        %v2533 = vmax.f32 %v2529, 0.0
        %v2534 = vmax.f32 %v2530, 0.0
        %v2535 = vmax.f32 %v2531, 0.0
        %v2536 = vmax.f32 %v2532, 0.0
        %v2537 = vadd.f32 %v2533, %v2224
        %v2538 = vadd.f32 %v2534, %v2225
        %v2539 = vadd.f32 %v2535, %v2226
        %v2540 = vadd.f32 %v2536, %v2227
        %v2541 = vld [vmem:[%s5] sm:$0xff]
        %v2542 = vld [vmem:[%s5 + $0x8] sm:$0xff]
        %v2543 = vld [vmem:[%s5 + $0x10] sm:$0xff]
        %v2544 = vld [vmem:[%s5 + $0x18] sm:$0xff]
        %v2545 = vld [vmem:[%s6] sm:$0x1]
        %v2547 = vlaneseq
        %v2548 = vshrl.u32 %v2547, 7
        %v2549 = vsub.s32 0, %v2548
        %v2550 = vrot.slane %v2545, %v2549
        %v2553 = vsel %vm320, %v2537, 0
        %v2556 = vsel %vm320, %v2538, 0
        %v2559 = vsel %vm320, %v2539, 0
        %v2562 = vsel %vm320, %v2540, 0
        %2564 = vmatprep.subr.mxu0 0.0
        %2565 = vmatpush1.msra.mxu0 0.0
        %2566 = vmatprep.subr.mxu0 0.0
        %2567 = vmatpush1.msra.mxu0 0.0
        %2568 = vmatprep.subr.mxu0 0.0
        %2569 = vmatpush1.msra.mxu0 0.0
        %2570 = vmatprep.subr.mxu0 0.0
        %2571 = vmatpush1.msra.mxu0 0.0
        %2572 = vmatprep.subr.mxu0 0.0
        %2573 = vmatpush1.msra.mxu0 0.0
        %2574 = vmatprep.subr.mxu0 0.0
        %2575 = vmatpush1.msra.mxu0 0.0
        %2576 = vmatprep.subr.mxu0 0.0
        %2577 = vmatpush1.msra.mxu0 0.0
        %2578 = vmatprep.subr.mxu0 0.0
        %2579 = vmatpush1.msra.mxu0 0.0
        %2580 = vmatprep.subr.mxu0 0.0
        %2581 = vmatpush1.msra.mxu0 0.0
        %2582 = vmatprep.subr.mxu0 0.0
        %2583 = vmatpush1.msra.mxu0 0.0
        %2584 = vmatprep.subr.mxu0 0.0
        %2585 = vmatpush1.msra.mxu0 0.0
        %2586 = vmatprep.subr.mxu0 0.0
        %2587 = vmatpush1.msra.mxu0 0.0
        %2588 = vmatprep.subr.mxu0 0.0
        %2589 = vmatpush1.msra.mxu0 %v2544
        %2590 = vmatprep.subr.mxu0 0.0
        %2591 = vmatpush1.msra.mxu0 %v2543
        %2592 = vmatprep.subr.mxu0 0.0
        %2593 = vmatpush1.msra.mxu0 %v2542
        %2594 = vmatprep.subr.mxu0 0.0
        %2595 = vmatpush1.msra.mxu0 %v2541
        %2596 = vmatprep.subr.mxu0 0.0
        %2597 = vmatpush2.msra.mxu0 0.0
        %2598 = vmatprep.subr.mxu0 0.0
        %2599 = vmatpush2.msra.mxu0 0.0
        %2600 = vmatprep.subr.mxu0 0.0
        %2601 = vmatpush2.msra.mxu0 0.0
        %2602 = vmatprep.subr.mxu0 0.0
        %2603 = vmatpush2.msra.mxu0 0.0
        %2604 = vmatprep.subr.mxu0 0.0
        %2605 = vmatpush2.msra.mxu0 0.0
        %2606 = vmatprep.subr.mxu0 0.0
        %2607 = vmatpush2.msra.mxu0 0.0
        %2608 = vmatprep.subr.mxu0 0.0
        %2609 = vmatpush2.msra.mxu0 0.0
        %2610 = vmatprep.subr.mxu0 0.0
        %2611 = vmatpush2.msra.mxu0 0.0
        %2612 = vmatprep.subr.mxu0 0.0
        %2613 = vmatpush2.msra.mxu0 0.0
        %2614 = vmatprep.subr.mxu0 0.0
        %2615 = vmatpush2.msra.mxu0 0.0
        %2616 = vmatprep.subr.mxu0 0.0
        %2617 = vmatpush2.msra.mxu0 0.0
        %2618 = vmatprep.subr.mxu0 0.0
        %2619 = vmatpush2.msra.mxu0 0.0
        %2620 = vmatprep.subr.mxu0 0.0
        %2621 = vmatpush2.msra.mxu0 0.0
        %2622 = vmatprep.subr.mxu0 0.0
        %2623 = vmatpush2.msra.mxu0 0.0
        %2624 = vmatprep.subr.mxu0 0.0
        %2625 = vmatpush2.msra.mxu0 0.0
        %2626 = vmatprep.subr.mxu0 0.0
        %2627 = vmatpush2.msra.mxu0 0.0
        %2628 = vmatprep.mubr.f32.mxu0 0.0
        %2629 = vmatmul.mubr.f32.gmra.mxu0 %v2553
        %v2630 = vpop.f32.mrf.mxu0
        %v2631 = vadd.f32 %v2550, %v2630
        %v2632 = vpop.f32.mrf.mxu0
        %2633 = vmatprep.mubr.f32.mxu0 0.0
        %2634 = vmatmul.mubr.f32.gmra.mxu0 %v2556
        %v2635 = vpop.f32.mrf.mxu0
        %v2636 = vadd.f32 %v2550, %v2635
        %v2637 = vpop.f32.mrf.mxu0
        %2638 = vmatprep.mubr.f32.mxu0 0.0
        %2639 = vmatmul.mubr.f32.gmra.mxu0 %v2559
        %v2640 = vpop.f32.mrf.mxu0
        %v2641 = vadd.f32 %v2550, %v2640
        %v2642 = vpop.f32.mrf.mxu0
        %2643 = vmatprep.mubr.f32.mxu0 0.0
        %2644 = vmatmul.mubr.f32.gmra.mxu0 %v2562
        %v2645 = vpop.f32.mrf.mxu0
        %v2646 = vadd.f32 %v2550, %v2645
        %v2647 = vpop.f32.mrf.mxu0
        %2648 = vdwg.mxu0
        %2649 = vst.msk [vmem:[%s286] sm:$0xff] %vm320, %v2631
        %2650 = vst.msk [vmem:[%s286 + $0x8] sm:$0xff] %vm320, %v2636
        %2651 = vst.msk [vmem:[%s286 + $0x10] sm:$0xff] %vm320, %v2641
        %2652 = vst.msk [vmem:[%s286 + $0x18] sm:$0xff] %vm320, %v2646
        %s2653 = sand.u32 %s186, 1
        %s2654 = scalar_lea.sflag [#allocation3], %s2653
        %s2655 = sand.u32 %s186, 1
        %s2656 = smul.addr %s2655, 32
        %s2657 = scalar_lea.vmem [#allocation2], %s2656
        // Predicated region
        $region49: #{net_prot_sage.1} parent=47 // pred_check
          %p2658 = pneg %p196
        $region50: #{net_prot_sage.1} parent=47 // pred_check_branch
          %2660 = sbr.rel (%p2658) target = $region52
        $region51: #{net_prot_sage.1} parent=47 // pred_region
          %s2662 = ssub.s32 512, 512
          %2663 = vsyncadd %s2654, %s2662
          %s2664 = smul.addr %s21, 4
          %s2665 = smul.addr %s2664, 128
          %s2666 = scalar_lea.hbm %s7, %s2665
          %s2667 = sshll.u32 %s2657, 4
          %s2668 = int_to_ptr.vmem [resolvable:$true] %s2667
          %2673 = dma.vmem_to_hbm [thread:$0]  %s2668, 512, %s2666, %s2654, 128, 128, 8
        $region52: #{net_prot_sage.1} parent=47 // pred_fallthru
          _
      $region48: #{net_prot_sage.1} parent=5 // pred_fallthru
        _
      %p2674 = scmp.le.s32.totalorder 2, %s16
      // Predicated region
      $region53: #{net_prot_sage.1} parent=5 // pred_check
        %p2675 = pneg %p2674
      $region54: #{net_prot_sage.1} parent=5 // pred_check_branch
        %2677 = sbr.rel (%p2675) target = $region56
      $region55: #{net_prot_sage.1} parent=5 // pred_region
        %s2678 = ssub.s32 %s16, 2
        // Predicated region
        $region57: #{net_prot_sage.1} parent=55 // pred_check
          %p2679 = pneg %p202
        $region58: #{net_prot_sage.1} parent=55 // pred_check_branch
          %2681 = sbr.rel (%p2679) target = $region60
        $region59: #{net_prot_sage.1} parent=55 // pred_region
          %s2682 = sand.u32 %s187, 1
          %s2683 = scalar_lea.sflag [#allocation3], %s2682
          %s2684 = sand.u32 %s187, 1
          %s2685 = smul.addr %s2684, 32
          %s2686 = scalar_lea.vmem [#allocation2], %s2685
          %2687 = dma.done %s2683, 512
        $region60: #{net_prot_sage.1} parent=55 // pred_fallthru
          _
      $region56: #{net_prot_sage.1} parent=5 // pred_fallthru
        _
    $region6: #{net_prot_sage.1} parent=1 // loop_footer
      %s20 = sadd.s32 1, %s16
    $region7: #{net_prot_sage.1} parent=1 // loop_footer_branch
      %15 = sbr.rel target = $region3
    $region8: #{net_prot_sage.1} parent=1 // loop_exit
      _
    %2688 = vsyncpa [#allocation3], 1
    %s2689 = scalar_lea.sflag [#allocation3], 1
    %2690 = vsyncpa %s2689, 1

</llo_original>
